<compile_context>
chip_gen: v7x
topology: tpu7x:2x2x1
jax: 0.10.0
libtpu: 0.0.40
codegen_flags: <defaults>
</compile_context>

<pallas_src>
from functools import partial

import numpy as np

import jax
import jax.numpy as jnp
from jax.experimental import pallas as pl
from jax.experimental.pallas import tpu as pltpu


# ----------------------------------------------------------------------------
# Fused forward kernel: one grid step == whole batch, end to end.
# ----------------------------------------------------------------------------
def _fused_forward_kernel(x_ref, masks_ref, w0_ref, b0_ref, wh_ref, bh_ref,
                          ffw_ref, ffb_ref, o_ref, stk_ref, *,
                          C, B, depth, shifts):
    # x_ref   : (C*B, HW) f32   input slab (rows = c*B + b; only rows [0,B) used)
    # masks_ref:(9, 1, HW) f32  static 'same'-padding boundary mask per tap
    # w0_ref  : (C*B, 9*C*B)    input conv, tap-stacked + batch block-diag
    # b0_ref  : (C*B, 1)
    # wh_ref  : (depth, C*B, 9*C*B)   hidden convs, same packing
    # bh_ref  : (depth, C*B, 1)
    # ffw_ref : (C, HW, HW_out) bf16  pre-transposed FC weight
    # ffb_ref : (1, HW_out) f32
    # o_ref   : (B, HW_out) f32
    # stk_ref : (9*C*B, HW) f32 VMEM scratch for tap-stacked activations
    f32 = jnp.float32
    R = C * B

    def conv3x3_relu(act, w, bias):
        # Row k*R + r of the stack holds the (dh, dw)-shifted copy of
        # activation row r, zeroed outside the board by the static mask
        # (this realizes 'same' zero padding).  jnp.roll(a, s)[p] = a[p - s],
        # so shift = -(dh*W + dw) gathers the (dh, dw) neighbour.
        for k, sh in enumerate(shifts):
            if sh == 0:
                stk_ref[k * R:(k + 1) * R, :] = act
            else:
                stk_ref[k * R:(k + 1) * R, :] = (
                    jnp.roll(act, sh, axis=1) * masks_ref[k])
        # One MXU matmul per conv layer for the whole batch.
        out = jnp.dot(w, stk_ref[...], preferred_element_type=f32) + bias
        return jnp.maximum(out, 0.0)

    # ---- conv stack: activations stay (C*B, HW), f32, VMEM/vreg resident ----
    act = conv3x3_relu(x_ref[...], w0_ref[...], b0_ref[...])
    for d in range(depth):
        act = conv3x3_relu(act, wh_ref[d], bh_ref[d])

    # ---- FC head: y[b] = relu(ff_b + sum_c act[c, b, :] @ ffw_t[c]) ----
    # Rows c*B:(c+1)*B of `act` are the per-channel (B, HW) LHS blocks, so
    # each dot is a clean (B, HW) x (HW, HW_out) matmul; bf16 operands,
    # f32 accumulation, one lane-dense (B, HW_out) store at the end.
    acc = None
    for c in range(C):
        lhs = act[c * B:(c + 1) * B, :].astype(jnp.bfloat16)
        contrib = jnp.dot(lhs, ffw_ref[c], preferred_element_type=f32)
        acc = contrib if acc is None else acc + contrib
    o_ref[...] = jnp.maximum(acc + ffb_ref[...], 0.0)


def minesweeper_cnn_forward(packed, state):
    """packed: output of pack_params(); state: (B, H, W) f32 -> (B, H*W) f32."""
    B, H, W = state.shape
    HW = H * W
    C, depth = packed["C"], packed["depth"]
    assert B == packed["B"] and (H, W) == (packed["H"], packed["W"])
    HW_out = packed["ffb"].shape[1]

    # Input slab: channel-major / batch-minor rows; channel 0 holds the board,
    # rows [B, C*B) are zero (the input conv has a single input channel).
    x_slab = jnp.zeros((C * B, HW), jnp.float32)
    x_slab = x_slab.at[0:B, :].set(state.astype(jnp.float32).reshape(B, HW))

    kernel = partial(_fused_forward_kernel, C=C, B=B, depth=depth,
                     shifts=packed["shifts"])

    out = pl.pallas_call(
        kernel,
        out_shape=jax.ShapeDtypeStruct((B, HW_out), jnp.float32),
        grid=(1,),
        in_specs=[
            pl.BlockSpec((C * B, HW), lambda i: (0, 0)),
            pl.BlockSpec((9, 1, HW), lambda i: (0, 0, 0)),
            pl.BlockSpec(tuple(packed["w0"].shape), lambda i: (0, 0)),
            pl.BlockSpec(tuple(packed["b0"].shape), lambda i: (0, 0)),
            pl.BlockSpec(tuple(packed["wh"].shape), lambda i: (0, 0, 0)),
            pl.BlockSpec(tuple(packed["bh"].shape), lambda i: (0, 0, 0)),
            pl.BlockSpec(tuple(packed["ffw"].shape), lambda i: (0, 0, 0)),
            pl.BlockSpec(tuple(packed["ffb"].shape), lambda i: (0, 0)),
        ],
        out_specs=pl.BlockSpec((B, HW_out), lambda i: (0, 0)),
        scratch_shapes=[pltpu.VMEM((9 * C * B, HW), jnp.float32)],
        compiler_params=pltpu.CompilerParams(
            dimension_semantics=("arbitrary",),
            vmem_limit_bytes=32 * 1024 * 1024,   # safe on v5e/v6e/v7x
        ),
    )(x_slab, packed["masks"], packed["w0"], packed["b0"],
      packed["wh"], packed["bh"], packed["ffw"], packed["ffb"])
    return out


# ----------------------------------------------------------------------------
# Parameters: PyTorch layouts at init; one-time host-side repack for the kernel.
# ----------------------------------------------------------------------------
def init_params(key, board_size, n_channels, depth):
    H, W = board_size
    n_cells = H * W
    keys = jax.random.split(key, 2 * (depth + 2))
    ki = 0

    def nxt():
        nonlocal ki
        k = keys[ki]
        ki += 1
        return k

    params = {
        "input_w": jax.random.normal(nxt(), (n_channels, 1, 3, 3), jnp.float32) * 0.3,
        "input_b": jax.random.normal(nxt(), (n_channels,), jnp.float32) * 0.1,
        "cnn_w": [],
        "cnn_b": [],
    }
    for _ in range(depth):
        params["cnn_w"].append(
            jax.random.normal(nxt(), (n_channels, n_channels, 3, 3), jnp.float32) * 0.1)
        params["cnn_b"].append(
            jax.random.normal(nxt(), (n_channels,), jnp.float32) * 0.1)
    params["ff_w"] = jax.random.normal(
        nxt(), (n_cells, n_channels * n_cells), jnp.float32) * 0.02
    params["ff_b"] = jax.random.normal(nxt(), (n_cells,), jnp.float32) * 0.1
    return params


def pack_params(params, board_size, batch):
    """One-time host-side repack (conv weights tiny; ff_w transposed + bf16)."""
    H, W = board_size
    HW = H * W
    B = batch
    C = params["input_w"].shape[0]
    depth = len(params["cnn_w"])

    taps = [(kh - 1, kw - 1) for kh in range(3) for kw in range(3)]
    # jnp.roll(a, s)[p] = a[(p - s) % HW]  ->  gather of a[p + dh*W + dw]
    # needs shift = -(dh*W + dw).  Resolved statically, no hedged double roll.
    shifts = tuple(-(dh * W + dw) for dh, dw in taps)

    # Static boundary masks ('same' zero padding), built once in numpy.
    pos = np.arange(HW)
    row, col = pos // W, pos % W
    masks = np.stack([
        ((row + dh >= 0) & (row + dh < H) & (col + dw >= 0) & (col + dw < W)
         ).astype(np.float32).reshape(1, HW)
        for dh, dw in taps])                                      # (9, 1, HW)

    eye = np.eye(B, dtype=np.float32)

    def expand_conv(w):
        """(C_out, C_in, 3, 3) -> (C_out*B, 9*C_in*B): tap-stacked, batch block-diag."""
        w = np.asarray(w, np.float32)
        cols = [np.kron(w[:, :, kh, kw], eye)                     # (C_out*B, C_in*B)
                for kh in range(3) for kw in range(3)]
        return np.concatenate(cols, axis=1)

    def expand_bias(b):
        return np.repeat(np.asarray(b, np.float32), B).reshape(-1, 1)   # (C_out*B, 1)

    # Input conv: pad C_in from 1 to C with zeros so every layer shares the
    # same (C*B, 9*C*B) shape and 8-row-aligned scratch slices.
    w0_full = np.zeros((C, C, 3, 3), np.float32)
    w0_full[:, 0] = np.asarray(params["input_w"], np.float32)[:, 0]
    w0 = expand_conv(w0_full)
    b0 = expand_bias(params["input_b"])

    if depth:
        wh = np.stack([expand_conv(w) for w in params["cnn_w"]])        # (depth, C*B, 9*C*B)
        bh = np.stack([expand_bias(b) for b in params["cnn_b"]])        # (depth, C*B, 1)
    else:
        wh = np.zeros((1, C * B, 9 * C * B), np.float32)   # dummy, never read
        bh = np.zeros((1, C * B, 1), np.float32)

    # FC: pre-transpose once on the host to (C, HW_in, HW_out), cast to bf16
    # (this array carries ~95% of the forward's bytes and FLOPs).
    ffw = np.asarray(params["ff_w"], np.float32)                        # (HW_out, C*HW)
    hw_out = ffw.shape[0]
    ffw_t = ffw.reshape(hw_out, C, HW).transpose(1, 2, 0)               # (C, HW, HW_out)
    ffb = np.asarray(params["ff_b"], np.float32).reshape(1, hw_out)

    return dict(
        w0=jnp.asarray(w0), b0=jnp.asarray(b0),
        wh=jnp.asarray(wh), bh=jnp.asarray(bh),
        ffw=jnp.asarray(ffw_t).astype(jnp.bfloat16),
        ffb=jnp.asarray(ffb),
        masks=jnp.asarray(masks),
        shifts=shifts, depth=depth, C=C, B=B, H=H, W=W,
    )


# ----------------------------------------------------------------------------
# Pure-JAX reference (mirrors MineSweeperCNN.forward) for a correctness check.
# ----------------------------------------------------------------------------
def _reference_forward(params, state):
    hi = jax.lax.Precision.HIGHEST
    v = state[:, None, :, :].astype(jnp.float32)

    def conv3x3(v, w, b):
        Bv, Cin, H, W = v.shape
        vp = jnp.pad(v, ((0, 0), (0, 0), (1, 1), (1, 1)))
        out = jnp.zeros((Bv, w.shape[0], H, W), jnp.float32)
        for kh in range(3):
            for kw in range(3):
                out = out + jnp.einsum("oc,bchw->bohw", w[:, :, kh, kw],
                                       vp[:, :, kh:kh + H, kw:kw + W], precision=hi)
        return jax.nn.relu(out + b[None, :, None, None])

    v = conv3x3(v, params["input_w"], params["input_b"])
    for w, b in zip(params["cnn_w"], params["cnn_b"]):
        v = conv3x3(v, w, b)
    v = v.reshape(v.shape[0], -1)
    return jax.nn.relu(jnp.dot(v, params["ff_w"].T, precision=hi) + params["ff_b"])


if __name__ == "__main__":
    board_size = (16, 16)
    n_channels = 4
    depth = 2
    batch = 2

    key = jax.random.PRNGKey(0)
    pkey, xkey = jax.random.split(key)
    params = init_params(pkey, board_size, n_channels, depth)
    state = jax.random.uniform(xkey, (batch,) + board_size, jnp.float32)

    packed = pack_params(params, board_size, batch)
    out = jax.block_until_ready(minesweeper_cnn_forward(packed, state))

    assert out.shape == (batch, board_size[0] * board_size[1])
    assert out.dtype == jnp.float32

    ref = jax.block_until_ready(_reference_forward(params, state))
    # FC weights run in bf16 on the MXU (f32 accumulation) -> slightly looser
    # tolerance than the pure-f32 version; still far below any real-bug delta.
    np.testing.assert_allclose(np.asarray(out), np.asarray(ref),
                               rtol=1e-2, atol=5e-3)
    print("KERNEL_OK")
</pallas_src>

<mosaic_0001>
module attributes {stable_mosaic.version = 11 : i64} {
  func.func @_fused_forward_kernel(%arg0: i32, %arg1: memref<8x256xf32, #tpu.memory_space<vmem>>, %arg2: memref<9x1x256xf32, #tpu.memory_space<vmem>>, %arg3: memref<8x72xf32, #tpu.memory_space<vmem>>, %arg4: memref<8x1xf32, #tpu.memory_space<vmem>>, %arg5: memref<2x8x72xf32, #tpu.memory_space<vmem>>, %arg6: memref<2x8x1xf32, #tpu.memory_space<vmem>>, %arg7: memref<4x256x256xbf16, #tpu.memory_space<vmem>>, %arg8: memref<1x256xf32, #tpu.memory_space<vmem>>, %arg9: memref<2x256xf32, #tpu.memory_space<vmem>>, %arg10: memref<72x256xf32, #tpu.memory_space<vmem>>) attributes {dimension_semantics = [#tpu.dimension_semantics<arbitrary>], iteration_bounds = array<i64: 1>, scalar_prefetch = 0 : i64, scratch_operands = 1 : i64, tpu.core_type = #tpu.core_type<tc>, window_params = [{pipeline_mode = #tpu.pipeline_mode<synchronous>, transform_indices = @transform_0, window_bounds = array<i64: 8, 256>}, {pipeline_mode = #tpu.pipeline_mode<synchronous>, transform_indices = @transform_1, window_bounds = array<i64: 9, 1, 256>}, {pipeline_mode = #tpu.pipeline_mode<synchronous>, transform_indices = @transform_2, window_bounds = array<i64: 8, 72>}, {pipeline_mode = #tpu.pipeline_mode<synchronous>, transform_indices = @transform_3, window_bounds = array<i64: 8, 1>}, {pipeline_mode = #tpu.pipeline_mode<synchronous>, transform_indices = @transform_4, window_bounds = array<i64: 2, 8, 72>}, {pipeline_mode = #tpu.pipeline_mode<synchronous>, transform_indices = @transform_5, window_bounds = array<i64: 2, 8, 1>}, {pipeline_mode = #tpu.pipeline_mode<synchronous>, transform_indices = @transform_6, window_bounds = array<i64: 4, 256, 256>}, {pipeline_mode = #tpu.pipeline_mode<synchronous>, transform_indices = @transform_7, window_bounds = array<i64: 1, 256>}, {pipeline_mode = #tpu.pipeline_mode<synchronous>, transform_indices = @transform_8, window_bounds = array<i64: 2, 256>}]} {
    %c0 = arith.constant 0 : index
    %c0_0 = arith.constant 0 : index
    %0 = vector.load %arg1[%c0, %c0_0] : memref<8x256xf32, #tpu.memory_space<vmem>>, vector<8x256xf32>
    %c0_1 = arith.constant 0 : index
    %c0_2 = arith.constant 0 : index
    %1 = vector.load %arg3[%c0_1, %c0_2] : memref<8x72xf32, #tpu.memory_space<vmem>>, vector<8x72xf32>
    %c0_3 = arith.constant 0 : index
    %c0_4 = arith.constant 0 : index
    %2 = vector.load %arg4[%c0_3, %c0_4] : memref<8x1xf32, #tpu.memory_space<vmem>>, vector<8x1xf32>
    %3 = vector.extract_strided_slice %0 {offsets = [0, 239], sizes = [8, 17], strides = [1, 1]} : vector<8x256xf32> to vector<8x17xf32>
    %4 = vector.extract_strided_slice %0 {offsets = [0, 0], sizes = [8, 239], strides = [1, 1]} : vector<8x256xf32> to vector<8x239xf32>
    %5 = tpu.concatenate %3, %4 in 1 : vector<8x17xf32>, vector<8x239xf32> -> vector<8x256xf32>
    %c0_5 = arith.constant 0 : index
    %c0_6 = arith.constant 0 : index
    %c0_7 = arith.constant 0 : index
    %6 = vector.load %arg2[%c0_5, %c0_6, %c0_7] : memref<9x1x256xf32, #tpu.memory_space<vmem>>, vector<1x1x256xf32>
    %7 = vector.shape_cast %6 : vector<1x1x256xf32> to vector<1x256xf32>
    %8 = vector.broadcast %7 : vector<1x256xf32> to vector<8x256xf32>
    %9 = arith.mulf %5, %8 : vector<8x256xf32>
    %c0_8 = arith.constant 0 : index
    %c0_9 = arith.constant 0 : index
    %10 = vector.load %arg10[%c0_8, %c0_9] : memref<72x256xf32, #tpu.memory_space<vmem>>, vector<8x256xf32>
    tpu.vector_store %arg10[%c0_8, %c0_9], %9 {strides = array<i32>} : memref<72x256xf32, #tpu.memory_space<vmem>>, vector<8x256xf32>,
    %11 = vector.extract_strided_slice %0 {offsets = [0, 240], sizes = [8, 16], strides = [1, 1]} : vector<8x256xf32> to vector<8x16xf32>
    %12 = vector.extract_strided_slice %0 {offsets = [0, 0], sizes = [8, 240], strides = [1, 1]} : vector<8x256xf32> to vector<8x240xf32>
    %13 = tpu.concatenate %11, %12 in 1 : vector<8x16xf32>, vector<8x240xf32> -> vector<8x256xf32>
    %c1 = arith.constant 1 : index
    %c0_10 = arith.constant 0 : index
    %c0_11 = arith.constant 0 : index
    %14 = vector.load %arg2[%c1, %c0_10, %c0_11] : memref<9x1x256xf32, #tpu.memory_space<vmem>>, vector<1x1x256xf32>
    %15 = vector.shape_cast %14 : vector<1x1x256xf32> to vector<1x256xf32>
    %16 = vector.broadcast %15 : vector<1x256xf32> to vector<8x256xf32>
    %17 = arith.mulf %13, %16 : vector<8x256xf32>
    %c8 = arith.constant 8 : index
    %c0_12 = arith.constant 0 : index
    %18 = vector.load %arg10[%c8, %c0_12] : memref<72x256xf32, #tpu.memory_space<vmem>>, vector<8x256xf32>
    tpu.vector_store %arg10[%c8, %c0_12], %17 {strides = array<i32>} : memref<72x256xf32, #tpu.memory_space<vmem>>, vector<8x256xf32>,
    %19 = vector.extract_strided_slice %0 {offsets = [0, 241], sizes = [8, 15], strides = [1, 1]} : vector<8x256xf32> to vector<8x15xf32>
    %20 = vector.extract_strided_slice %0 {offsets = [0, 0], sizes = [8, 241], strides = [1, 1]} : vector<8x256xf32> to vector<8x241xf32>
    %21 = tpu.concatenate %19, %20 in 1 : vector<8x15xf32>, vector<8x241xf32> -> vector<8x256xf32>
    %c2 = arith.constant 2 : index
    %c0_13 = arith.constant 0 : index
    %c0_14 = arith.constant 0 : index
    %22 = vector.load %arg2[%c2, %c0_13, %c0_14] : memref<9x1x256xf32, #tpu.memory_space<vmem>>, vector<1x1x256xf32>
    %23 = vector.shape_cast %22 : vector<1x1x256xf32> to vector<1x256xf32>
    %24 = vector.broadcast %23 : vector<1x256xf32> to vector<8x256xf32>
    %25 = arith.mulf %21, %24 : vector<8x256xf32>
    %c16 = arith.constant 16 : index
    %c0_15 = arith.constant 0 : index
    %26 = vector.load %arg10[%c16, %c0_15] : memref<72x256xf32, #tpu.memory_space<vmem>>, vector<8x256xf32>
    tpu.vector_store %arg10[%c16, %c0_15], %25 {strides = array<i32>} : memref<72x256xf32, #tpu.memory_space<vmem>>, vector<8x256xf32>,
    %27 = vector.extract_strided_slice %0 {offsets = [0, 255], sizes = [8, 1], strides = [1, 1]} : vector<8x256xf32> to vector<8x1xf32>
    %28 = vector.extract_strided_slice %0 {offsets = [0, 0], sizes = [8, 255], strides = [1, 1]} : vector<8x256xf32> to vector<8x255xf32>
    %29 = tpu.concatenate %27, %28 in 1 : vector<8x1xf32>, vector<8x255xf32> -> vector<8x256xf32>
    %c3 = arith.constant 3 : index
    %c0_16 = arith.constant 0 : index
    %c0_17 = arith.constant 0 : index
    %30 = vector.load %arg2[%c3, %c0_16, %c0_17] : memref<9x1x256xf32, #tpu.memory_space<vmem>>, vector<1x1x256xf32>
    %31 = vector.shape_cast %30 : vector<1x1x256xf32> to vector<1x256xf32>
    %32 = vector.broadcast %31 : vector<1x256xf32> to vector<8x256xf32>
    %33 = arith.mulf %29, %32 : vector<8x256xf32>
    %c24 = arith.constant 24 : index
    %c0_18 = arith.constant 0 : index
    %34 = vector.load %arg10[%c24, %c0_18] : memref<72x256xf32, #tpu.memory_space<vmem>>, vector<8x256xf32>
    tpu.vector_store %arg10[%c24, %c0_18], %33 {strides = array<i32>} : memref<72x256xf32, #tpu.memory_space<vmem>>, vector<8x256xf32>,
    %c32 = arith.constant 32 : index
    %c0_19 = arith.constant 0 : index
    %35 = vector.load %arg10[%c32, %c0_19] : memref<72x256xf32, #tpu.memory_space<vmem>>, vector<8x256xf32>
    tpu.vector_store %arg10[%c32, %c0_19], %0 {strides = array<i32>} : memref<72x256xf32, #tpu.memory_space<vmem>>, vector<8x256xf32>,
    %36 = vector.extract_strided_slice %0 {offsets = [0, 1], sizes = [8, 255], strides = [1, 1]} : vector<8x256xf32> to vector<8x255xf32>
    %37 = vector.extract_strided_slice %0 {offsets = [0, 0], sizes = [8, 1], strides = [1, 1]} : vector<8x256xf32> to vector<8x1xf32>
    %38 = tpu.concatenate %36, %37 in 1 : vector<8x255xf32>, vector<8x1xf32> -> vector<8x256xf32>
    %c5 = arith.constant 5 : index
    %c0_20 = arith.constant 0 : index
    %c0_21 = arith.constant 0 : index
    %39 = vector.load %arg2[%c5, %c0_20, %c0_21] : memref<9x1x256xf32, #tpu.memory_space<vmem>>, vector<1x1x256xf32>
    %40 = vector.shape_cast %39 : vector<1x1x256xf32> to vector<1x256xf32>
    %41 = vector.broadcast %40 : vector<1x256xf32> to vector<8x256xf32>
    %42 = arith.mulf %38, %41 : vector<8x256xf32>
    %c40 = arith.constant 40 : index
    %c0_22 = arith.constant 0 : index
    %43 = vector.load %arg10[%c40, %c0_22] : memref<72x256xf32, #tpu.memory_space<vmem>>, vector<8x256xf32>
    tpu.vector_store %arg10[%c40, %c0_22], %42 {strides = array<i32>} : memref<72x256xf32, #tpu.memory_space<vmem>>, vector<8x256xf32>,
    %44 = vector.extract_strided_slice %0 {offsets = [0, 15], sizes = [8, 241], strides = [1, 1]} : vector<8x256xf32> to vector<8x241xf32>
    %45 = vector.extract_strided_slice %0 {offsets = [0, 0], sizes = [8, 15], strides = [1, 1]} : vector<8x256xf32> to vector<8x15xf32>
    %46 = tpu.concatenate %44, %45 in 1 : vector<8x241xf32>, vector<8x15xf32> -> vector<8x256xf32>
    %c6 = arith.constant 6 : index
    %c0_23 = arith.constant 0 : index
    %c0_24 = arith.constant 0 : index
    %47 = vector.load %arg2[%c6, %c0_23, %c0_24] : memref<9x1x256xf32, #tpu.memory_space<vmem>>, vector<1x1x256xf32>
    %48 = vector.shape_cast %47 : vector<1x1x256xf32> to vector<1x256xf32>
    %49 = vector.broadcast %48 : vector<1x256xf32> to vector<8x256xf32>
    %50 = arith.mulf %46, %49 : vector<8x256xf32>
    %c48 = arith.constant 48 : index
    %c0_25 = arith.constant 0 : index
    %51 = vector.load %arg10[%c48, %c0_25] : memref<72x256xf32, #tpu.memory_space<vmem>>, vector<8x256xf32>
    tpu.vector_store %arg10[%c48, %c0_25], %50 {strides = array<i32>} : memref<72x256xf32, #tpu.memory_space<vmem>>, vector<8x256xf32>,
    %52 = vector.extract_strided_slice %0 {offsets = [0, 16], sizes = [8, 240], strides = [1, 1]} : vector<8x256xf32> to vector<8x240xf32>
    %53 = vector.extract_strided_slice %0 {offsets = [0, 0], sizes = [8, 16], strides = [1, 1]} : vector<8x256xf32> to vector<8x16xf32>
    %54 = tpu.concatenate %52, %53 in 1 : vector<8x240xf32>, vector<8x16xf32> -> vector<8x256xf32>
    %c7 = arith.constant 7 : index
    %c0_26 = arith.constant 0 : index
    %c0_27 = arith.constant 0 : index
    %55 = vector.load %arg2[%c7, %c0_26, %c0_27] : memref<9x1x256xf32, #tpu.memory_space<vmem>>, vector<1x1x256xf32>
    %56 = vector.shape_cast %55 : vector<1x1x256xf32> to vector<1x256xf32>
    %57 = vector.broadcast %56 : vector<1x256xf32> to vector<8x256xf32>
    %58 = arith.mulf %54, %57 : vector<8x256xf32>
    %c56 = arith.constant 56 : index
    %c0_28 = arith.constant 0 : index
    %59 = vector.load %arg10[%c56, %c0_28] : memref<72x256xf32, #tpu.memory_space<vmem>>, vector<8x256xf32>
    tpu.vector_store %arg10[%c56, %c0_28], %58 {strides = array<i32>} : memref<72x256xf32, #tpu.memory_space<vmem>>, vector<8x256xf32>,
    %60 = vector.extract_strided_slice %0 {offsets = [0, 17], sizes = [8, 239], strides = [1, 1]} : vector<8x256xf32> to vector<8x239xf32>
    %61 = vector.extract_strided_slice %0 {offsets = [0, 0], sizes = [8, 17], strides = [1, 1]} : vector<8x256xf32> to vector<8x17xf32>
    %62 = tpu.concatenate %60, %61 in 1 : vector<8x239xf32>, vector<8x17xf32> -> vector<8x256xf32>
    %c8_29 = arith.constant 8 : index
    %c0_30 = arith.constant 0 : index
    %c0_31 = arith.constant 0 : index
    %63 = vector.load %arg2[%c8_29, %c0_30, %c0_31] : memref<9x1x256xf32, #tpu.memory_space<vmem>>, vector<1x1x256xf32>
    %64 = vector.shape_cast %63 : vector<1x1x256xf32> to vector<1x256xf32>
    %65 = vector.broadcast %64 : vector<1x256xf32> to vector<8x256xf32>
    %66 = arith.mulf %62, %65 : vector<8x256xf32>
    %c64 = arith.constant 64 : index
    %c0_32 = arith.constant 0 : index
    %67 = vector.load %arg10[%c64, %c0_32] : memref<72x256xf32, #tpu.memory_space<vmem>>, vector<8x256xf32>
    tpu.vector_store %arg10[%c64, %c0_32], %66 {strides = array<i32>} : memref<72x256xf32, #tpu.memory_space<vmem>>, vector<8x256xf32>,
    %c0_33 = arith.constant 0 : index
    %c0_34 = arith.constant 0 : index
    %68 = vector.load %arg10[%c0_33, %c0_34] : memref<72x256xf32, #tpu.memory_space<vmem>>, vector<72x256xf32>
    %cst = arith.constant dense<0.000000e+00> : vector<8x256xf32>
    %69 = tpu.matmul %1, %68, %cst {dimension_numbers = #tpu.dot_dimension_numbers<[1], [0], [0], [1], [0, 0, 1, 1], [], []>} : vector<8x72xf32>, vector<72x256xf32>, vector<8x256xf32> -> vector<8x256xf32>
    %70 = vector.broadcast %2 : vector<8x1xf32> to vector<8x256xf32>
    %71 = arith.addf %69, %70 : vector<8x256xf32>
    %cst_35 = arith.constant 0.000000e+00 : f32
    %72 = vector.broadcast %cst_35 : f32 to vector<8x256xf32>
    %73 = arith.maximumf %71, %72 : vector<8x256xf32>
    %c0_36 = arith.constant 0 : index
    %c0_37 = arith.constant 0 : index
    %c0_38 = arith.constant 0 : index
    %74 = vector.load %arg5[%c0_36, %c0_37, %c0_38] : memref<2x8x72xf32, #tpu.memory_space<vmem>>, vector<1x8x72xf32>
    %75 = vector.shape_cast %74 : vector<1x8x72xf32> to vector<8x72xf32>
    %c0_39 = arith.constant 0 : index
    %c0_40 = arith.constant 0 : index
    %c0_41 = arith.constant 0 : index
    %76 = vector.load %arg6[%c0_39, %c0_40, %c0_41] : memref<2x8x1xf32, #tpu.memory_space<vmem>>, vector<1x8x1xf32>
    %77 = vector.shape_cast %76 : vector<1x8x1xf32> to vector<8x1xf32>
    %78 = vector.extract_strided_slice %73 {offsets = [0, 239], sizes = [8, 17], strides = [1, 1]} : vector<8x256xf32> to vector<8x17xf32>
    %79 = vector.extract_strided_slice %73 {offsets = [0, 0], sizes = [8, 239], strides = [1, 1]} : vector<8x256xf32> to vector<8x239xf32>
    %80 = tpu.concatenate %78, %79 in 1 : vector<8x17xf32>, vector<8x239xf32> -> vector<8x256xf32>
    %c0_42 = arith.constant 0 : index
    %c0_43 = arith.constant 0 : index
    %c0_44 = arith.constant 0 : index
    %81 = vector.load %arg2[%c0_42, %c0_43, %c0_44] : memref<9x1x256xf32, #tpu.memory_space<vmem>>, vector<1x1x256xf32>
    %82 = vector.shape_cast %81 : vector<1x1x256xf32> to vector<1x256xf32>
    %83 = vector.broadcast %82 : vector<1x256xf32> to vector<8x256xf32>
    %84 = arith.mulf %80, %83 : vector<8x256xf32>
    %c0_45 = arith.constant 0 : index
    %c0_46 = arith.constant 0 : index
    %85 = vector.load %arg10[%c0_45, %c0_46] : memref<72x256xf32, #tpu.memory_space<vmem>>, vector<8x256xf32>
    tpu.vector_store %arg10[%c0_45, %c0_46], %84 {strides = array<i32>} : memref<72x256xf32, #tpu.memory_space<vmem>>, vector<8x256xf32>,
    %86 = vector.extract_strided_slice %73 {offsets = [0, 240], sizes = [8, 16], strides = [1, 1]} : vector<8x256xf32> to vector<8x16xf32>
    %87 = vector.extract_strided_slice %73 {offsets = [0, 0], sizes = [8, 240], strides = [1, 1]} : vector<8x256xf32> to vector<8x240xf32>
    %88 = tpu.concatenate %86, %87 in 1 : vector<8x16xf32>, vector<8x240xf32> -> vector<8x256xf32>
    %c1_47 = arith.constant 1 : index
    %c0_48 = arith.constant 0 : index
    %c0_49 = arith.constant 0 : index
    %89 = vector.load %arg2[%c1_47, %c0_48, %c0_49] : memref<9x1x256xf32, #tpu.memory_space<vmem>>, vector<1x1x256xf32>
    %90 = vector.shape_cast %89 : vector<1x1x256xf32> to vector<1x256xf32>
    %91 = vector.broadcast %90 : vector<1x256xf32> to vector<8x256xf32>
    %92 = arith.mulf %88, %91 : vector<8x256xf32>
    %c8_50 = arith.constant 8 : index
    %c0_51 = arith.constant 0 : index
    %93 = vector.load %arg10[%c8_50, %c0_51] : memref<72x256xf32, #tpu.memory_space<vmem>>, vector<8x256xf32>
    tpu.vector_store %arg10[%c8_50, %c0_51], %92 {strides = array<i32>} : memref<72x256xf32, #tpu.memory_space<vmem>>, vector<8x256xf32>,
    %94 = vector.extract_strided_slice %73 {offsets = [0, 241], sizes = [8, 15], strides = [1, 1]} : vector<8x256xf32> to vector<8x15xf32>
    %95 = vector.extract_strided_slice %73 {offsets = [0, 0], sizes = [8, 241], strides = [1, 1]} : vector<8x256xf32> to vector<8x241xf32>
    %96 = tpu.concatenate %94, %95 in 1 : vector<8x15xf32>, vector<8x241xf32> -> vector<8x256xf32>
    %c2_52 = arith.constant 2 : index
    %c0_53 = arith.constant 0 : index
    %c0_54 = arith.constant 0 : index
    %97 = vector.load %arg2[%c2_52, %c0_53, %c0_54] : memref<9x1x256xf32, #tpu.memory_space<vmem>>, vector<1x1x256xf32>
    %98 = vector.shape_cast %97 : vector<1x1x256xf32> to vector<1x256xf32>
    %99 = vector.broadcast %98 : vector<1x256xf32> to vector<8x256xf32>
    %100 = arith.mulf %96, %99 : vector<8x256xf32>
    %c16_55 = arith.constant 16 : index
    %c0_56 = arith.constant 0 : index
    %101 = vector.load %arg10[%c16_55, %c0_56] : memref<72x256xf32, #tpu.memory_space<vmem>>, vector<8x256xf32>
    tpu.vector_store %arg10[%c16_55, %c0_56], %100 {strides = array<i32>} : memref<72x256xf32, #tpu.memory_space<vmem>>, vector<8x256xf32>,
    %102 = vector.extract_strided_slice %73 {offsets = [0, 255], sizes = [8, 1], strides = [1, 1]} : vector<8x256xf32> to vector<8x1xf32>
    %103 = vector.extract_strided_slice %73 {offsets = [0, 0], sizes = [8, 255], strides = [1, 1]} : vector<8x256xf32> to vector<8x255xf32>
    %104 = tpu.concatenate %102, %103 in 1 : vector<8x1xf32>, vector<8x255xf32> -> vector<8x256xf32>
    %c3_57 = arith.constant 3 : index
    %c0_58 = arith.constant 0 : index
    %c0_59 = arith.constant 0 : index
    %105 = vector.load %arg2[%c3_57, %c0_58, %c0_59] : memref<9x1x256xf32, #tpu.memory_space<vmem>>, vector<1x1x256xf32>
    %106 = vector.shape_cast %105 : vector<1x1x256xf32> to vector<1x256xf32>
    %107 = vector.broadcast %106 : vector<1x256xf32> to vector<8x256xf32>
    %108 = arith.mulf %104, %107 : vector<8x256xf32>
    %c24_60 = arith.constant 24 : index
    %c0_61 = arith.constant 0 : index
    %109 = vector.load %arg10[%c24_60, %c0_61] : memref<72x256xf32, #tpu.memory_space<vmem>>, vector<8x256xf32>
    tpu.vector_store %arg10[%c24_60, %c0_61], %108 {strides = array<i32>} : memref<72x256xf32, #tpu.memory_space<vmem>>, vector<8x256xf32>,
    %c32_62 = arith.constant 32 : index
    %c0_63 = arith.constant 0 : index
    %110 = vector.load %arg10[%c32_62, %c0_63] : memref<72x256xf32, #tpu.memory_space<vmem>>, vector<8x256xf32>
    tpu.vector_store %arg10[%c32_62, %c0_63], %73 {strides = array<i32>} : memref<72x256xf32, #tpu.memory_space<vmem>>, vector<8x256xf32>,
    %111 = vector.extract_strided_slice %73 {offsets = [0, 1], sizes = [8, 255], strides = [1, 1]} : vector<8x256xf32> to vector<8x255xf32>
    %112 = vector.extract_strided_slice %73 {offsets = [0, 0], sizes = [8, 1], strides = [1, 1]} : vector<8x256xf32> to vector<8x1xf32>
    %113 = tpu.concatenate %111, %112 in 1 : vector<8x255xf32>, vector<8x1xf32> -> vector<8x256xf32>
    %c5_64 = arith.constant 5 : index
    %c0_65 = arith.constant 0 : index
    %c0_66 = arith.constant 0 : index
    %114 = vector.load %arg2[%c5_64, %c0_65, %c0_66] : memref<9x1x256xf32, #tpu.memory_space<vmem>>, vector<1x1x256xf32>
    %115 = vector.shape_cast %114 : vector<1x1x256xf32> to vector<1x256xf32>
    %116 = vector.broadcast %115 : vector<1x256xf32> to vector<8x256xf32>
    %117 = arith.mulf %113, %116 : vector<8x256xf32>
    %c40_67 = arith.constant 40 : index
    %c0_68 = arith.constant 0 : index
    %118 = vector.load %arg10[%c40_67, %c0_68] : memref<72x256xf32, #tpu.memory_space<vmem>>, vector<8x256xf32>
    tpu.vector_store %arg10[%c40_67, %c0_68], %117 {strides = array<i32>} : memref<72x256xf32, #tpu.memory_space<vmem>>, vector<8x256xf32>,
    %119 = vector.extract_strided_slice %73 {offsets = [0, 15], sizes = [8, 241], strides = [1, 1]} : vector<8x256xf32> to vector<8x241xf32>
    %120 = vector.extract_strided_slice %73 {offsets = [0, 0], sizes = [8, 15], strides = [1, 1]} : vector<8x256xf32> to vector<8x15xf32>
    %121 = tpu.concatenate %119, %120 in 1 : vector<8x241xf32>, vector<8x15xf32> -> vector<8x256xf32>
    %c6_69 = arith.constant 6 : index
    %c0_70 = arith.constant 0 : index
    %c0_71 = arith.constant 0 : index
    %122 = vector.load %arg2[%c6_69, %c0_70, %c0_71] : memref<9x1x256xf32, #tpu.memory_space<vmem>>, vector<1x1x256xf32>
    %123 = vector.shape_cast %122 : vector<1x1x256xf32> to vector<1x256xf32>
    %124 = vector.broadcast %123 : vector<1x256xf32> to vector<8x256xf32>
    %125 = arith.mulf %121, %124 : vector<8x256xf32>
    %c48_72 = arith.constant 48 : index
    %c0_73 = arith.constant 0 : index
    %126 = vector.load %arg10[%c48_72, %c0_73] : memref<72x256xf32, #tpu.memory_space<vmem>>, vector<8x256xf32>
    tpu.vector_store %arg10[%c48_72, %c0_73], %125 {strides = array<i32>} : memref<72x256xf32, #tpu.memory_space<vmem>>, vector<8x256xf32>,
    %127 = vector.extract_strided_slice %73 {offsets = [0, 16], sizes = [8, 240], strides = [1, 1]} : vector<8x256xf32> to vector<8x240xf32>
    %128 = vector.extract_strided_slice %73 {offsets = [0, 0], sizes = [8, 16], strides = [1, 1]} : vector<8x256xf32> to vector<8x16xf32>
    %129 = tpu.concatenate %127, %128 in 1 : vector<8x240xf32>, vector<8x16xf32> -> vector<8x256xf32>
    %c7_74 = arith.constant 7 : index
    %c0_75 = arith.constant 0 : index
    %c0_76 = arith.constant 0 : index
    %130 = vector.load %arg2[%c7_74, %c0_75, %c0_76] : memref<9x1x256xf32, #tpu.memory_space<vmem>>, vector<1x1x256xf32>
    %131 = vector.shape_cast %130 : vector<1x1x256xf32> to vector<1x256xf32>
    %132 = vector.broadcast %131 : vector<1x256xf32> to vector<8x256xf32>
    %133 = arith.mulf %129, %132 : vector<8x256xf32>
    %c56_77 = arith.constant 56 : index
    %c0_78 = arith.constant 0 : index
    %134 = vector.load %arg10[%c56_77, %c0_78] : memref<72x256xf32, #tpu.memory_space<vmem>>, vector<8x256xf32>
    tpu.vector_store %arg10[%c56_77, %c0_78], %133 {strides = array<i32>} : memref<72x256xf32, #tpu.memory_space<vmem>>, vector<8x256xf32>,
    %135 = vector.extract_strided_slice %73 {offsets = [0, 17], sizes = [8, 239], strides = [1, 1]} : vector<8x256xf32> to vector<8x239xf32>
    %136 = vector.extract_strided_slice %73 {offsets = [0, 0], sizes = [8, 17], strides = [1, 1]} : vector<8x256xf32> to vector<8x17xf32>
    %137 = tpu.concatenate %135, %136 in 1 : vector<8x239xf32>, vector<8x17xf32> -> vector<8x256xf32>
    %c8_79 = arith.constant 8 : index
    %c0_80 = arith.constant 0 : index
    %c0_81 = arith.constant 0 : index
    %138 = vector.load %arg2[%c8_79, %c0_80, %c0_81] : memref<9x1x256xf32, #tpu.memory_space<vmem>>, vector<1x1x256xf32>
    %139 = vector.shape_cast %138 : vector<1x1x256xf32> to vector<1x256xf32>
    %140 = vector.broadcast %139 : vector<1x256xf32> to vector<8x256xf32>
    %141 = arith.mulf %137, %140 : vector<8x256xf32>
    %c64_82 = arith.constant 64 : index
    %c0_83 = arith.constant 0 : index
    %142 = vector.load %arg10[%c64_82, %c0_83] : memref<72x256xf32, #tpu.memory_space<vmem>>, vector<8x256xf32>
    tpu.vector_store %arg10[%c64_82, %c0_83], %141 {strides = array<i32>} : memref<72x256xf32, #tpu.memory_space<vmem>>, vector<8x256xf32>,
    %c0_84 = arith.constant 0 : index
    %c0_85 = arith.constant 0 : index
    %143 = vector.load %arg10[%c0_84, %c0_85] : memref<72x256xf32, #tpu.memory_space<vmem>>, vector<72x256xf32>
    %cst_86 = arith.constant dense<0.000000e+00> : vector<8x256xf32>
    %144 = tpu.matmul %75, %143, %cst_86 {dimension_numbers = #tpu.dot_dimension_numbers<[1], [0], [0], [1], [0, 0, 1, 1], [], []>} : vector<8x72xf32>, vector<72x256xf32>, vector<8x256xf32> -> vector<8x256xf32>
    %145 = vector.broadcast %77 : vector<8x1xf32> to vector<8x256xf32>
    %146 = arith.addf %144, %145 : vector<8x256xf32>
    %cst_87 = arith.constant 0.000000e+00 : f32
    %147 = vector.broadcast %cst_87 : f32 to vector<8x256xf32>
    %148 = arith.maximumf %146, %147 : vector<8x256xf32>
    %c1_88 = arith.constant 1 : index
    %c0_89 = arith.constant 0 : index
    %c0_90 = arith.constant 0 : index
    %149 = vector.load %arg5[%c1_88, %c0_89, %c0_90] : memref<2x8x72xf32, #tpu.memory_space<vmem>>, vector<1x8x72xf32>
    %150 = vector.shape_cast %149 : vector<1x8x72xf32> to vector<8x72xf32>
    %c1_91 = arith.constant 1 : index
    %c0_92 = arith.constant 0 : index
    %c0_93 = arith.constant 0 : index
    %151 = vector.load %arg6[%c1_91, %c0_92, %c0_93] : memref<2x8x1xf32, #tpu.memory_space<vmem>>, vector<1x8x1xf32>
    %152 = vector.shape_cast %151 : vector<1x8x1xf32> to vector<8x1xf32>
    %153 = vector.extract_strided_slice %148 {offsets = [0, 239], sizes = [8, 17], strides = [1, 1]} : vector<8x256xf32> to vector<8x17xf32>
    %154 = vector.extract_strided_slice %148 {offsets = [0, 0], sizes = [8, 239], strides = [1, 1]} : vector<8x256xf32> to vector<8x239xf32>
    %155 = tpu.concatenate %153, %154 in 1 : vector<8x17xf32>, vector<8x239xf32> -> vector<8x256xf32>
    %c0_94 = arith.constant 0 : index
    %c0_95 = arith.constant 0 : index
    %c0_96 = arith.constant 0 : index
    %156 = vector.load %arg2[%c0_94, %c0_95, %c0_96] : memref<9x1x256xf32, #tpu.memory_space<vmem>>, vector<1x1x256xf32>
    %157 = vector.shape_cast %156 : vector<1x1x256xf32> to vector<1x256xf32>
    %158 = vector.broadcast %157 : vector<1x256xf32> to vector<8x256xf32>
    %159 = arith.mulf %155, %158 : vector<8x256xf32>
    %c0_97 = arith.constant 0 : index
    %c0_98 = arith.constant 0 : index
    %160 = vector.load %arg10[%c0_97, %c0_98] : memref<72x256xf32, #tpu.memory_space<vmem>>, vector<8x256xf32>
    tpu.vector_store %arg10[%c0_97, %c0_98], %159 {strides = array<i32>} : memref<72x256xf32, #tpu.memory_space<vmem>>, vector<8x256xf32>,
    %161 = vector.extract_strided_slice %148 {offsets = [0, 240], sizes = [8, 16], strides = [1, 1]} : vector<8x256xf32> to vector<8x16xf32>
    %162 = vector.extract_strided_slice %148 {offsets = [0, 0], sizes = [8, 240], strides = [1, 1]} : vector<8x256xf32> to vector<8x240xf32>
    %163 = tpu.concatenate %161, %162 in 1 : vector<8x16xf32>, vector<8x240xf32> -> vector<8x256xf32>
    %c1_99 = arith.constant 1 : index
    %c0_100 = arith.constant 0 : index
    %c0_101 = arith.constant 0 : index
    %164 = vector.load %arg2[%c1_99, %c0_100, %c0_101] : memref<9x1x256xf32, #tpu.memory_space<vmem>>, vector<1x1x256xf32>
    %165 = vector.shape_cast %164 : vector<1x1x256xf32> to vector<1x256xf32>
    %166 = vector.broadcast %165 : vector<1x256xf32> to vector<8x256xf32>
    %167 = arith.mulf %163, %166 : vector<8x256xf32>
    %c8_102 = arith.constant 8 : index
    %c0_103 = arith.constant 0 : index
    %168 = vector.load %arg10[%c8_102, %c0_103] : memref<72x256xf32, #tpu.memory_space<vmem>>, vector<8x256xf32>
    tpu.vector_store %arg10[%c8_102, %c0_103], %167 {strides = array<i32>} : memref<72x256xf32, #tpu.memory_space<vmem>>, vector<8x256xf32>,
    %169 = vector.extract_strided_slice %148 {offsets = [0, 241], sizes = [8, 15], strides = [1, 1]} : vector<8x256xf32> to vector<8x15xf32>
    %170 = vector.extract_strided_slice %148 {offsets = [0, 0], sizes = [8, 241], strides = [1, 1]} : vector<8x256xf32> to vector<8x241xf32>
    %171 = tpu.concatenate %169, %170 in 1 : vector<8x15xf32>, vector<8x241xf32> -> vector<8x256xf32>
    %c2_104 = arith.constant 2 : index
    %c0_105 = arith.constant 0 : index
    %c0_106 = arith.constant 0 : index
    %172 = vector.load %arg2[%c2_104, %c0_105, %c0_106] : memref<9x1x256xf32, #tpu.memory_space<vmem>>, vector<1x1x256xf32>
    %173 = vector.shape_cast %172 : vector<1x1x256xf32> to vector<1x256xf32>
    %174 = vector.broadcast %173 : vector<1x256xf32> to vector<8x256xf32>
    %175 = arith.mulf %171, %174 : vector<8x256xf32>
    %c16_107 = arith.constant 16 : index
    %c0_108 = arith.constant 0 : index
    %176 = vector.load %arg10[%c16_107, %c0_108] : memref<72x256xf32, #tpu.memory_space<vmem>>, vector<8x256xf32>
    tpu.vector_store %arg10[%c16_107, %c0_108], %175 {strides = array<i32>} : memref<72x256xf32, #tpu.memory_space<vmem>>, vector<8x256xf32>,
    %177 = vector.extract_strided_slice %148 {offsets = [0, 255], sizes = [8, 1], strides = [1, 1]} : vector<8x256xf32> to vector<8x1xf32>
    %178 = vector.extract_strided_slice %148 {offsets = [0, 0], sizes = [8, 255], strides = [1, 1]} : vector<8x256xf32> to vector<8x255xf32>
    %179 = tpu.concatenate %177, %178 in 1 : vector<8x1xf32>, vector<8x255xf32> -> vector<8x256xf32>
    %c3_109 = arith.constant 3 : index
    %c0_110 = arith.constant 0 : index
    %c0_111 = arith.constant 0 : index
    %180 = vector.load %arg2[%c3_109, %c0_110, %c0_111] : memref<9x1x256xf32, #tpu.memory_space<vmem>>, vector<1x1x256xf32>
    %181 = vector.shape_cast %180 : vector<1x1x256xf32> to vector<1x256xf32>
    %182 = vector.broadcast %181 : vector<1x256xf32> to vector<8x256xf32>
    %183 = arith.mulf %179, %182 : vector<8x256xf32>
    %c24_112 = arith.constant 24 : index
    %c0_113 = arith.constant 0 : index
    %184 = vector.load %arg10[%c24_112, %c0_113] : memref<72x256xf32, #tpu.memory_space<vmem>>, vector<8x256xf32>
    tpu.vector_store %arg10[%c24_112, %c0_113], %183 {strides = array<i32>} : memref<72x256xf32, #tpu.memory_space<vmem>>, vector<8x256xf32>,
    %c32_114 = arith.constant 32 : index
    %c0_115 = arith.constant 0 : index
    %185 = vector.load %arg10[%c32_114, %c0_115] : memref<72x256xf32, #tpu.memory_space<vmem>>, vector<8x256xf32>
    tpu.vector_store %arg10[%c32_114, %c0_115], %148 {strides = array<i32>} : memref<72x256xf32, #tpu.memory_space<vmem>>, vector<8x256xf32>,
    %186 = vector.extract_strided_slice %148 {offsets = [0, 1], sizes = [8, 255], strides = [1, 1]} : vector<8x256xf32> to vector<8x255xf32>
    %187 = vector.extract_strided_slice %148 {offsets = [0, 0], sizes = [8, 1], strides = [1, 1]} : vector<8x256xf32> to vector<8x1xf32>
    %188 = tpu.concatenate %186, %187 in 1 : vector<8x255xf32>, vector<8x1xf32> -> vector<8x256xf32>
    %c5_116 = arith.constant 5 : index
    %c0_117 = arith.constant 0 : index
    %c0_118 = arith.constant 0 : index
    %189 = vector.load %arg2[%c5_116, %c0_117, %c0_118] : memref<9x1x256xf32, #tpu.memory_space<vmem>>, vector<1x1x256xf32>
    %190 = vector.shape_cast %189 : vector<1x1x256xf32> to vector<1x256xf32>
    %191 = vector.broadcast %190 : vector<1x256xf32> to vector<8x256xf32>
    %192 = arith.mulf %188, %191 : vector<8x256xf32>
    %c40_119 = arith.constant 40 : index
    %c0_120 = arith.constant 0 : index
    %193 = vector.load %arg10[%c40_119, %c0_120] : memref<72x256xf32, #tpu.memory_space<vmem>>, vector<8x256xf32>
    tpu.vector_store %arg10[%c40_119, %c0_120], %192 {strides = array<i32>} : memref<72x256xf32, #tpu.memory_space<vmem>>, vector<8x256xf32>,
    %194 = vector.extract_strided_slice %148 {offsets = [0, 15], sizes = [8, 241], strides = [1, 1]} : vector<8x256xf32> to vector<8x241xf32>
    %195 = vector.extract_strided_slice %148 {offsets = [0, 0], sizes = [8, 15], strides = [1, 1]} : vector<8x256xf32> to vector<8x15xf32>
    %196 = tpu.concatenate %194, %195 in 1 : vector<8x241xf32>, vector<8x15xf32> -> vector<8x256xf32>
    %c6_121 = arith.constant 6 : index
    %c0_122 = arith.constant 0 : index
    %c0_123 = arith.constant 0 : index
    %197 = vector.load %arg2[%c6_121, %c0_122, %c0_123] : memref<9x1x256xf32, #tpu.memory_space<vmem>>, vector<1x1x256xf32>
    %198 = vector.shape_cast %197 : vector<1x1x256xf32> to vector<1x256xf32>
    %199 = vector.broadcast %198 : vector<1x256xf32> to vector<8x256xf32>
    %200 = arith.mulf %196, %199 : vector<8x256xf32>
    %c48_124 = arith.constant 48 : index
    %c0_125 = arith.constant 0 : index
    %201 = vector.load %arg10[%c48_124, %c0_125] : memref<72x256xf32, #tpu.memory_space<vmem>>, vector<8x256xf32>
    tpu.vector_store %arg10[%c48_124, %c0_125], %200 {strides = array<i32>} : memref<72x256xf32, #tpu.memory_space<vmem>>, vector<8x256xf32>,
    %202 = vector.extract_strided_slice %148 {offsets = [0, 16], sizes = [8, 240], strides = [1, 1]} : vector<8x256xf32> to vector<8x240xf32>
    %203 = vector.extract_strided_slice %148 {offsets = [0, 0], sizes = [8, 16], strides = [1, 1]} : vector<8x256xf32> to vector<8x16xf32>
    %204 = tpu.concatenate %202, %203 in 1 : vector<8x240xf32>, vector<8x16xf32> -> vector<8x256xf32>
    %c7_126 = arith.constant 7 : index
    %c0_127 = arith.constant 0 : index
    %c0_128 = arith.constant 0 : index
    %205 = vector.load %arg2[%c7_126, %c0_127, %c0_128] : memref<9x1x256xf32, #tpu.memory_space<vmem>>, vector<1x1x256xf32>
    %206 = vector.shape_cast %205 : vector<1x1x256xf32> to vector<1x256xf32>
    %207 = vector.broadcast %206 : vector<1x256xf32> to vector<8x256xf32>
    %208 = arith.mulf %204, %207 : vector<8x256xf32>
    %c56_129 = arith.constant 56 : index
    %c0_130 = arith.constant 0 : index
    %209 = vector.load %arg10[%c56_129, %c0_130] : memref<72x256xf32, #tpu.memory_space<vmem>>, vector<8x256xf32>
    tpu.vector_store %arg10[%c56_129, %c0_130], %208 {strides = array<i32>} : memref<72x256xf32, #tpu.memory_space<vmem>>, vector<8x256xf32>,
    %210 = vector.extract_strided_slice %148 {offsets = [0, 17], sizes = [8, 239], strides = [1, 1]} : vector<8x256xf32> to vector<8x239xf32>
    %211 = vector.extract_strided_slice %148 {offsets = [0, 0], sizes = [8, 17], strides = [1, 1]} : vector<8x256xf32> to vector<8x17xf32>
    %212 = tpu.concatenate %210, %211 in 1 : vector<8x239xf32>, vector<8x17xf32> -> vector<8x256xf32>
    %c8_131 = arith.constant 8 : index
    %c0_132 = arith.constant 0 : index
    %c0_133 = arith.constant 0 : index
    %213 = vector.load %arg2[%c8_131, %c0_132, %c0_133] : memref<9x1x256xf32, #tpu.memory_space<vmem>>, vector<1x1x256xf32>
    %214 = vector.shape_cast %213 : vector<1x1x256xf32> to vector<1x256xf32>
    %215 = vector.broadcast %214 : vector<1x256xf32> to vector<8x256xf32>
    %216 = arith.mulf %212, %215 : vector<8x256xf32>
    %c64_134 = arith.constant 64 : index
    %c0_135 = arith.constant 0 : index
    %217 = vector.load %arg10[%c64_134, %c0_135] : memref<72x256xf32, #tpu.memory_space<vmem>>, vector<8x256xf32>
    tpu.vector_store %arg10[%c64_134, %c0_135], %216 {strides = array<i32>} : memref<72x256xf32, #tpu.memory_space<vmem>>, vector<8x256xf32>,
    %c0_136 = arith.constant 0 : index
    %c0_137 = arith.constant 0 : index
    %218 = vector.load %arg10[%c0_136, %c0_137] : memref<72x256xf32, #tpu.memory_space<vmem>>, vector<72x256xf32>
    %cst_138 = arith.constant dense<0.000000e+00> : vector<8x256xf32>
    %219 = tpu.matmul %150, %218, %cst_138 {dimension_numbers = #tpu.dot_dimension_numbers<[1], [0], [0], [1], [0, 0, 1, 1], [], []>} : vector<8x72xf32>, vector<72x256xf32>, vector<8x256xf32> -> vector<8x256xf32>
    %220 = vector.broadcast %152 : vector<8x1xf32> to vector<8x256xf32>
    %221 = arith.addf %219, %220 : vector<8x256xf32>
    %cst_139 = arith.constant 0.000000e+00 : f32
    %222 = vector.broadcast %cst_139 : f32 to vector<8x256xf32>
    %223 = arith.maximumf %221, %222 : vector<8x256xf32>
    %224 = vector.extract_strided_slice %223 {offsets = [0, 0], sizes = [2, 256], strides = [1, 1]} : vector<8x256xf32> to vector<2x256xf32>
    %225 = arith.truncf %224 : vector<2x256xf32> to vector<2x256xbf16>
    %c0_140 = arith.constant 0 : index
    %c0_141 = arith.constant 0 : index
    %c0_142 = arith.constant 0 : index
    %226 = vector.load %arg7[%c0_140, %c0_141, %c0_142] : memref<4x256x256xbf16, #tpu.memory_space<vmem>>, vector<1x256x256xbf16>
    %227 = vector.shape_cast %226 : vector<1x256x256xbf16> to vector<256x256xbf16>
    %cst_143 = arith.constant dense<0.000000e+00> : vector<2x256xf32>
    %228 = tpu.matmul %225, %227, %cst_143 {dimension_numbers = #tpu.dot_dimension_numbers<[1], [0], [0], [1], [0, 0, 1, 1], [], []>} : vector<2x256xbf16>, vector<256x256xbf16>, vector<2x256xf32> -> vector<2x256xf32>
    %229 = vector.extract_strided_slice %223 {offsets = [2, 0], sizes = [2, 256], strides = [1, 1]} : vector<8x256xf32> to vector<2x256xf32>
    %230 = arith.truncf %229 : vector<2x256xf32> to vector<2x256xbf16>
    %c1_144 = arith.constant 1 : index
    %c0_145 = arith.constant 0 : index
    %c0_146 = arith.constant 0 : index
    %231 = vector.load %arg7[%c1_144, %c0_145, %c0_146] : memref<4x256x256xbf16, #tpu.memory_space<vmem>>, vector<1x256x256xbf16>
    %232 = vector.shape_cast %231 : vector<1x256x256xbf16> to vector<256x256xbf16>
    %cst_147 = arith.constant dense<0.000000e+00> : vector<2x256xf32>
    %233 = tpu.matmul %230, %232, %cst_147 {dimension_numbers = #tpu.dot_dimension_numbers<[1], [0], [0], [1], [0, 0, 1, 1], [], []>} : vector<2x256xbf16>, vector<256x256xbf16>, vector<2x256xf32> -> vector<2x256xf32>
    %234 = arith.addf %228, %233 : vector<2x256xf32>
    %235 = vector.extract_strided_slice %223 {offsets = [4, 0], sizes = [2, 256], strides = [1, 1]} : vector<8x256xf32> to vector<2x256xf32>
    %236 = arith.truncf %235 : vector<2x256xf32> to vector<2x256xbf16>
    %c2_148 = arith.constant 2 : index
    %c0_149 = arith.constant 0 : index
    %c0_150 = arith.constant 0 : index
    %237 = vector.load %arg7[%c2_148, %c0_149, %c0_150] : memref<4x256x256xbf16, #tpu.memory_space<vmem>>, vector<1x256x256xbf16>
    %238 = vector.shape_cast %237 : vector<1x256x256xbf16> to vector<256x256xbf16>
    %cst_151 = arith.constant dense<0.000000e+00> : vector<2x256xf32>
    %239 = tpu.matmul %236, %238, %cst_151 {dimension_numbers = #tpu.dot_dimension_numbers<[1], [0], [0], [1], [0, 0, 1, 1], [], []>} : vector<2x256xbf16>, vector<256x256xbf16>, vector<2x256xf32> -> vector<2x256xf32>
    %240 = arith.addf %234, %239 : vector<2x256xf32>
    %241 = vector.extract_strided_slice %223 {offsets = [6, 0], sizes = [2, 256], strides = [1, 1]} : vector<8x256xf32> to vector<2x256xf32>
    %242 = arith.truncf %241 : vector<2x256xf32> to vector<2x256xbf16>
    %c3_152 = arith.constant 3 : index
    %c0_153 = arith.constant 0 : index
    %c0_154 = arith.constant 0 : index
    %243 = vector.load %arg7[%c3_152, %c0_153, %c0_154] : memref<4x256x256xbf16, #tpu.memory_space<vmem>>, vector<1x256x256xbf16>
    %244 = vector.shape_cast %243 : vector<1x256x256xbf16> to vector<256x256xbf16>
    %cst_155 = arith.constant dense<0.000000e+00> : vector<2x256xf32>
    %245 = tpu.matmul %242, %244, %cst_155 {dimension_numbers = #tpu.dot_dimension_numbers<[1], [0], [0], [1], [0, 0, 1, 1], [], []>} : vector<2x256xbf16>, vector<256x256xbf16>, vector<2x256xf32> -> vector<2x256xf32>
    %246 = arith.addf %240, %245 : vector<2x256xf32>
    %c0_156 = arith.constant 0 : index
    %c0_157 = arith.constant 0 : index
    %247 = vector.load %arg8[%c0_156, %c0_157] : memref<1x256xf32, #tpu.memory_space<vmem>>, vector<1x256xf32>
    %248 = vector.broadcast %247 : vector<1x256xf32> to vector<2x256xf32>
    %249 = arith.addf %246, %248 : vector<2x256xf32>
    %cst_158 = arith.constant 0.000000e+00 : f32
    %250 = vector.broadcast %cst_158 : f32 to vector<2x256xf32>
    %251 = arith.maximumf %249, %250 : vector<2x256xf32>
    %c0_159 = arith.constant 0 : index
    %c0_160 = arith.constant 0 : index
    %252 = vector.load %arg9[%c0_159, %c0_160] : memref<2x256xf32, #tpu.memory_space<vmem>>, vector<2x256xf32>
    tpu.vector_store %arg9[%c0_159, %c0_160], %251 {strides = array<i32>} : memref<2x256xf32, #tpu.memory_space<vmem>>, vector<2x256xf32>,
    return
  }
  func.func @transform_0(%arg0: i32) -> (i32, i32) {
    %c0_i32 = arith.constant 0 : i32
    %c0_i32_0 = arith.constant 0 : i32
    %c0_i32_1 = arith.constant 0 : i32
    return %c0_i32, %c0_i32_0 : i32, i32
  }
  func.func @transform_1(%arg0: i32) -> (i32, i32, i32) {
    %c0_i32 = arith.constant 0 : i32
    %c0_i32_0 = arith.constant 0 : i32
    %c0_i32_1 = arith.constant 0 : i32
    %c0_i32_2 = arith.constant 0 : i32
    return %c0_i32, %c0_i32_0, %c0_i32_1 : i32, i32, i32
  }
  func.func @transform_2(%arg0: i32) -> (i32, i32) {
    %c0_i32 = arith.constant 0 : i32
    %c0_i32_0 = arith.constant 0 : i32
    %c0_i32_1 = arith.constant 0 : i32
    return %c0_i32, %c0_i32_0 : i32, i32
  }
  func.func @transform_3(%arg0: i32) -> (i32, i32) {
    %c0_i32 = arith.constant 0 : i32
    %c0_i32_0 = arith.constant 0 : i32
    %c0_i32_1 = arith.constant 0 : i32
    return %c0_i32, %c0_i32_0 : i32, i32
  }
  func.func @transform_4(%arg0: i32) -> (i32, i32, i32) {
    %c0_i32 = arith.constant 0 : i32
    %c0_i32_0 = arith.constant 0 : i32
    %c0_i32_1 = arith.constant 0 : i32
    %c0_i32_2 = arith.constant 0 : i32
    return %c0_i32, %c0_i32_0, %c0_i32_1 : i32, i32, i32
  }
  func.func @transform_5(%arg0: i32) -> (i32, i32, i32) {
    %c0_i32 = arith.constant 0 : i32
    %c0_i32_0 = arith.constant 0 : i32
    %c0_i32_1 = arith.constant 0 : i32
    %c0_i32_2 = arith.constant 0 : i32
    return %c0_i32, %c0_i32_0, %c0_i32_1 : i32, i32, i32
  }
  func.func @transform_6(%arg0: i32) -> (i32, i32, i32) {
    %c0_i32 = arith.constant 0 : i32
    %c0_i32_0 = arith.constant 0 : i32
    %c0_i32_1 = arith.constant 0 : i32
    %c0_i32_2 = arith.constant 0 : i32
    return %c0_i32, %c0_i32_0, %c0_i32_1 : i32, i32, i32
  }
  func.func @transform_7(%arg0: i32) -> (i32, i32) {
    %c0_i32 = arith.constant 0 : i32
    %c0_i32_0 = arith.constant 0 : i32
    %c0_i32_1 = arith.constant 0 : i32
    return %c0_i32, %c0_i32_0 : i32, i32
  }
  func.func @transform_8(%arg0: i32) -> (i32, i32) {
    %c0_i32 = arith.constant 0 : i32
    %c0_i32_0 = arith.constant 0 : i32
    %c0_i32_1 = arith.constant 0 : i32
    return %c0_i32, %c0_i32_0 : i32, i32
  }
}

</mosaic_0001>

<llo_original>
// kernel: tpu_custom_call.1
$region0: #{tpu_custom_call.1}
  #allocation0 [shape = 'u32[]', space=smem, size = 0x4, offset = 0x4, fixed_abs, tag = 'smem constant byte address 0x4 - core index']
  #allocation1 [shape = 'u32[144,128]{1,0:T(1,128)}', space=vmem, size = 0x12000, scoped, tag = 'internal scratch']
  #allocation2 [shape = 'f32[72,256]{1,0:T(8,128)}', space=vmem, size = 0x12000, scoped, tag = 'scratch operand']
  %s0 = inlined_call_operand.hbm [shape: f32[8,256], index: 0, kind: input, shape index: {}]
  %s1 = inlined_call_operand.vmem [shape: f32[9,1,256], index: 1, kind: input, shape index: {}]
  %s2 = inlined_call_operand.hbm [shape: f32[8,72], index: 2, kind: input, shape index: {}]
  %s3 = inlined_call_operand.vmem [shape: f32[8,1], index: 3, kind: input, shape index: {}]
  %s4 = inlined_call_operand.vmem [shape: f32[2,8,72], index: 4, kind: input, shape index: {}]
  %s5 = inlined_call_operand.vmem [shape: f32[2,8,1], index: 5, kind: input, shape index: {}]
  %s6 = inlined_call_operand.hbm [shape: bf16[4,256,256], index: 6, kind: input, shape index: {}]
  %s7 = inlined_call_operand.vmem [shape: f32[1,256], index: 7, kind: input, shape index: {}]
  %s8 = inlined_call_operand.hbm [shape: f32[2,256], index: 8, kind: output, shape index: {}]
  %s9 = sld [smem:[#allocation0]]
  $region54: #{tpu_custom_call.1} parent=0
    _
  %s11 = ssub.s32 1, %s9
  %s12 = scalar_select 0, %s11, %s9
  $region1: #{tpu_custom_call.1} parent=0
    #allocation3 [shape = 'u8[8192]{0}', space=vmem, size = 0x2000, scoped, tag = 'input window, operand 0, single buffered']
    #allocation4 [shape = 's32[1]{0}', space=sflag, size = 0x4, scoped, tag = 'scoped memory for tpu_custom_call.1']
    #allocation5 [shape = 's32[1]{0}', space=sflag, size = 0x4, scoped, tag = 'scoped memory for tpu_custom_call.1']
    #allocation6 [shape = 'u8[4096]{0}', space=vmem, size = 0x1000, scoped, tag = 'input window, operand 2, single buffered']
    #allocation7 [shape = 's32[1]{0}', space=sflag, size = 0x4, scoped, tag = 'scoped memory for tpu_custom_call.1']
    #allocation8 [shape = 'u8[524288]{0}', space=vmem, size = 0x80000, scoped, tag = 'input window, operand 6, single buffered']
    #allocation9 [shape = 'u8[2048]{0}', space=vmem, size = 0x800, scoped, tag = 'output window, operand 0, single buffered']
    %13 = vsyncpa [#allocation4], 0
    %14 = vsyncpa [#allocation7], 0
    %15 = vsyncpa [#allocation5], 0
    // Predicated region
    $region2: #{tpu_custom_call.1} parent=1 // pred_check
      _
    $region3: #{tpu_custom_call.1} parent=1 // pred_check_branch
      %17 = sbr.rel (0) target = $region5
    $region4: #{tpu_custom_call.1} parent=1 // pred_region
      %s19 = ssub.s32 256, 256
      %20 = vsyncadd [#allocation4], %s19
      %s22 = sshll.u32 [#allocation3], 4
      %s23 = int_to_ptr.vmem [resolvable:$true] %s22
      %25 = dma.hbm_to_vmem [thread:$0]  %s0, 256, %s23, [#allocation4]
    $region5: #{tpu_custom_call.1} parent=1 // pred_fallthru
      _
    // Predicated region
    $region6: #{tpu_custom_call.1} parent=1 // pred_check
      _
    $region7: #{tpu_custom_call.1} parent=1 // pred_check_branch
      %27 = sbr.rel (0) target = $region9
    $region8: #{tpu_custom_call.1} parent=1 // pred_region
      _
    $region9: #{tpu_custom_call.1} parent=1 // pred_fallthru
      _
    // Predicated region
    $region10: #{tpu_custom_call.1} parent=1 // pred_check
      _
    $region11: #{tpu_custom_call.1} parent=1 // pred_check_branch
      %29 = sbr.rel (0) target = $region13
    $region12: #{tpu_custom_call.1} parent=1 // pred_region
      %s31 = ssub.s32 128, 128
      %32 = vsyncadd [#allocation7], %s31
      %s34 = sshll.u32 [#allocation6], 4
      %s35 = int_to_ptr.vmem [resolvable:$true] %s34
      %37 = dma.hbm_to_vmem [thread:$0]  %s2, 128, %s35, [#allocation7]
    $region13: #{tpu_custom_call.1} parent=1 // pred_fallthru
      _
    // Predicated region
    $region14: #{tpu_custom_call.1} parent=1 // pred_check
      _
    $region15: #{tpu_custom_call.1} parent=1 // pred_check_branch
      %39 = sbr.rel (0) target = $region17
    $region16: #{tpu_custom_call.1} parent=1 // pred_region
      _
    $region17: #{tpu_custom_call.1} parent=1 // pred_fallthru
      _
    // Predicated region
    $region18: #{tpu_custom_call.1} parent=1 // pred_check
      _
    $region19: #{tpu_custom_call.1} parent=1 // pred_check_branch
      %41 = sbr.rel (0) target = $region21
    $region20: #{tpu_custom_call.1} parent=1 // pred_region
      _
    $region21: #{tpu_custom_call.1} parent=1 // pred_fallthru
      _
    // Predicated region
    $region22: #{tpu_custom_call.1} parent=1 // pred_check
      _
    $region23: #{tpu_custom_call.1} parent=1 // pred_check_branch
      %43 = sbr.rel (0) target = $region25
    $region24: #{tpu_custom_call.1} parent=1 // pred_region
      _
    $region25: #{tpu_custom_call.1} parent=1 // pred_fallthru
      _
    // Predicated region
    $region26: #{tpu_custom_call.1} parent=1 // pred_check
      _
    $region27: #{tpu_custom_call.1} parent=1 // pred_check_branch
      %45 = sbr.rel (0) target = $region29
    $region28: #{tpu_custom_call.1} parent=1 // pred_region
      %s47 = ssub.s32 16384, 16384
      %48 = vsyncadd [#allocation7], %s47
      %s49 = sshll.u32 [#allocation8], 4
      %s50 = int_to_ptr.vmem [resolvable:$true] %s49
      %55 = dma.hbm_to_vmem [thread:$0]  %s6, 16384, %s50, [#allocation7], 128, 128, 8
    $region29: #{tpu_custom_call.1} parent=1 // pred_fallthru
      _
    // Predicated region
    $region30: #{tpu_custom_call.1} parent=1 // pred_check
      _
    $region31: #{tpu_custom_call.1} parent=1 // pred_check_branch
      %57 = sbr.rel (0) target = $region33
    $region32: #{tpu_custom_call.1} parent=1 // pred_region
      _
    $region33: #{tpu_custom_call.1} parent=1 // pred_fallthru
      _
    // Predicated region
    $region34: #{tpu_custom_call.1} parent=1 // pred_check
      _
    $region35: #{tpu_custom_call.1} parent=1 // pred_check_branch
      %59 = sbr.rel (0) target = $region37
    $region36: #{tpu_custom_call.1} parent=1 // pred_region
      %60 = dma.done [#allocation4], 256
    $region37: #{tpu_custom_call.1} parent=1 // pred_fallthru
      _
    // Predicated region
    $region38: #{tpu_custom_call.1} parent=1 // pred_check
      _
    $region39: #{tpu_custom_call.1} parent=1 // pred_check_branch
      %62 = sbr.rel (0) target = $region41
    $region40: #{tpu_custom_call.1} parent=1 // pred_region
      %63 = dma.done [#allocation7], 128
    $region41: #{tpu_custom_call.1} parent=1 // pred_fallthru
      _
    // Predicated region
    $region42: #{tpu_custom_call.1} parent=1 // pred_check
      _
    $region43: #{tpu_custom_call.1} parent=1 // pred_check_branch
      %65 = sbr.rel (0) target = $region45
    $region44: #{tpu_custom_call.1} parent=1 // pred_region
      %66 = dma.done [#allocation7], 16384
    $region45: #{tpu_custom_call.1} parent=1 // pred_fallthru
      _
    %v67 = vld [vmem:[#allocation3] sm:$0xff]
    %v68 = vld [vmem:[#allocation3 + $0x8] sm:$0xff]
    %v69 = vld [vmem:[#allocation6] sm:$0xff]
    %v70 = vld [vmem:[%s3] sm:$0xff]
    %72 = vrot.lane.b32.xlu0 %v68, 17
    %v73 = vpop.permute.xlu0 %72
    %76 = vrot.lane.b32.xlu0 %v67, 17
    %v77 = vpop.permute.xlu0 %76
    %vm78 = vcmask 138240
    %v79 = vsel %vm78, %v77, %v73
    %v82 = vsel %vm78, %v73, %v77
    %v83 = vld [vmem:[%s1] sm:$0x3]
    %v85 = vlaneseq
    %v86 = vshrl.u32 %v85, 7
    %v87 = vsub.s32 0, %v86
    %v88 = vrot.slane %v83, %v87
    %v89 = vlaneseq
    %v90 = vshrl.u32 %v89, 7
    %v91 = vsub.s32 1, %v90
    %v92 = vrot.slane %v83, %v91
    %v95 = vmul.f32 %v82, %v88
    %v96 = vmul.f32 %v79, %v92
    %97 = vst [vmem:[#allocation2] sm:$0xff] %v95
    %98 = vst [vmem:[#allocation2 + $0x8] sm:$0xff] %v96
    %99 = vrot.lane.b32.xlu0 %v68, 16
    %v100 = vpop.permute.xlu0 %99
    %102 = vrot.lane.b32.xlu0 %v67, 16
    %v103 = vpop.permute.xlu0 %102
    %vm104 = vcmask 130048
    %v105 = vsel %vm104, %v103, %v100
    %v108 = vsel %vm104, %v100, %v103
    %s109 = scalar_lea.vmem %s1, 2
    %v110 = vld [vmem:[%s109] sm:$0x3]
    %v112 = vlaneseq
    %v113 = vshrl.u32 %v112, 7
    %v114 = vsub.s32 0, %v113
    %v115 = vrot.slane %v110, %v114
    %v116 = vlaneseq
    %v117 = vshrl.u32 %v116, 7
    %v118 = vsub.s32 1, %v117
    %v119 = vrot.slane %v110, %v118
    %v122 = vmul.f32 %v108, %v115
    %v123 = vmul.f32 %v105, %v119
    %124 = vst [vmem:[#allocation2 + $0x10] sm:$0xff] %v122
    %125 = vst [vmem:[#allocation2 + $0x18] sm:$0xff] %v123
    %126 = vrot.lane.b32.xlu0 %v68, 15
    %v127 = vpop.permute.xlu0 %126
    %129 = vrot.lane.b32.xlu0 %v67, 15
    %v130 = vpop.permute.xlu0 %129
    %vm131 = vcmask 121856
    %v132 = vsel %vm131, %v130, %v127
    %v135 = vsel %vm131, %v127, %v130
    %s136 = scalar_lea.vmem %s1, 4
    %v137 = vld [vmem:[%s136] sm:$0x3]
    %v139 = vlaneseq
    %v140 = vshrl.u32 %v139, 7
    %v141 = vsub.s32 0, %v140
    %v142 = vrot.slane %v137, %v141
    %v143 = vlaneseq
    %v144 = vshrl.u32 %v143, 7
    %v145 = vsub.s32 1, %v144
    %v146 = vrot.slane %v137, %v145
    %v149 = vmul.f32 %v135, %v142
    %v150 = vmul.f32 %v132, %v146
    %151 = vst [vmem:[#allocation2 + $0x20] sm:$0xff] %v149
    %152 = vst [vmem:[#allocation2 + $0x28] sm:$0xff] %v150
    %153 = vrot.lane.b32.xlu0 %v68, 1
    %v154 = vpop.permute.xlu0 %153
    %156 = vrot.lane.b32.xlu0 %v67, 1
    %v157 = vpop.permute.xlu0 %156
    %vm158 = vcmask 7168
    %v159 = vsel %vm158, %v157, %v154
    %v162 = vsel %vm158, %v154, %v157
    %s163 = scalar_lea.vmem %s1, 6
    %v164 = vld [vmem:[%s163] sm:$0x3]
    %v166 = vlaneseq
    %v167 = vshrl.u32 %v166, 7
    %v168 = vsub.s32 0, %v167
    %v169 = vrot.slane %v164, %v168
    %v170 = vlaneseq
    %v171 = vshrl.u32 %v170, 7
    %v172 = vsub.s32 1, %v171
    %v173 = vrot.slane %v164, %v172
    %v176 = vmul.f32 %v162, %v169
    %v177 = vmul.f32 %v159, %v173
    %178 = vst [vmem:[#allocation2 + $0x30] sm:$0xff] %v176
    %179 = vst [vmem:[#allocation2 + $0x38] sm:$0xff] %v177
    %180 = vst [vmem:[#allocation2 + $0x40] sm:$0xff] %v67
    %181 = vst [vmem:[#allocation2 + $0x48] sm:$0xff] %v68
    %182 = vrot.lane.b32.xlu0 %v67, 127
    %v183 = vpop.permute.xlu0 %182
    %184 = vrot.lane.b32.xlu0 %v68, 127
    %v185 = vpop.permute.xlu0 %184
    %vm186 = vcmask 1039360
    %v187 = vsel %vm186, %v183, %v185
    %v191 = vsel %vm186, %v185, %v183
    %s192 = scalar_lea.vmem %s1, 10
    %v193 = vld [vmem:[%s192] sm:$0x3]
    %v195 = vlaneseq
    %v196 = vshrl.u32 %v195, 7
    %v197 = vsub.s32 0, %v196
    %v198 = vrot.slane %v193, %v197
    %v199 = vlaneseq
    %v200 = vshrl.u32 %v199, 7
    %v201 = vsub.s32 1, %v200
    %v202 = vrot.slane %v193, %v201
    %v205 = vmul.f32 %v187, %v198
    %v206 = vmul.f32 %v191, %v202
    %207 = vst [vmem:[#allocation2 + $0x50] sm:$0xff] %v205
    %208 = vst [vmem:[#allocation2 + $0x58] sm:$0xff] %v206
    %209 = vrot.lane.b32.xlu0 %v67, 113
    %v210 = vpop.permute.xlu0 %209
    %211 = vrot.lane.b32.xlu0 %v68, 113
    %v212 = vpop.permute.xlu0 %211
    %vm213 = vcmask 924672
    %v214 = vsel %vm213, %v210, %v212
    %v218 = vsel %vm213, %v212, %v210
    %s219 = scalar_lea.vmem %s1, 12
    %v220 = vld [vmem:[%s219] sm:$0x3]
    %v222 = vlaneseq
    %v223 = vshrl.u32 %v222, 7
    %v224 = vsub.s32 0, %v223
    %v225 = vrot.slane %v220, %v224
    %v226 = vlaneseq
    %v227 = vshrl.u32 %v226, 7
    %v228 = vsub.s32 1, %v227
    %v229 = vrot.slane %v220, %v228
    %v232 = vmul.f32 %v214, %v225
    %v233 = vmul.f32 %v218, %v229
    %234 = vst [vmem:[#allocation2 + $0x60] sm:$0xff] %v232
    %235 = vst [vmem:[#allocation2 + $0x68] sm:$0xff] %v233
    %236 = vrot.lane.b32.xlu0 %v67, 112
    %v237 = vpop.permute.xlu0 %236
    %238 = vrot.lane.b32.xlu0 %v68, 112
    %v239 = vpop.permute.xlu0 %238
    %vm240 = vcmask 916480
    %v241 = vsel %vm240, %v237, %v239
    %v245 = vsel %vm240, %v239, %v237
    %s246 = scalar_lea.vmem %s1, 14
    %v247 = vld [vmem:[%s246] sm:$0x3]
    %v249 = vlaneseq
    %v250 = vshrl.u32 %v249, 7
    %v251 = vsub.s32 0, %v250
    %v252 = vrot.slane %v247, %v251
    %v253 = vlaneseq
    %v254 = vshrl.u32 %v253, 7
    %v255 = vsub.s32 1, %v254
    %v256 = vrot.slane %v247, %v255
    %v259 = vmul.f32 %v241, %v252
    %v260 = vmul.f32 %v245, %v256
    %261 = vst [vmem:[#allocation2 + $0x70] sm:$0xff] %v259
    %262 = vst [vmem:[#allocation2 + $0x78] sm:$0xff] %v260
    %263 = vrot.lane.b32.xlu0 %v67, 111
    %v264 = vpop.permute.xlu0 %263
    %265 = vrot.lane.b32.xlu0 %v68, 111
    %v266 = vpop.permute.xlu0 %265
    %vm267 = vcmask 908288
    %v268 = vsel %vm267, %v264, %v266
    %v272 = vsel %vm267, %v266, %v264
    %s273 = scalar_lea.vmem %s1, 16
    %v274 = vld [vmem:[%s273] sm:$0x3]
    %v276 = vlaneseq
    %v277 = vshrl.u32 %v276, 7
    %v278 = vsub.s32 0, %v277
    %v279 = vrot.slane %v274, %v278
    %v280 = vlaneseq
    %v281 = vshrl.u32 %v280, 7
    %v282 = vsub.s32 1, %v281
    %v283 = vrot.slane %v274, %v282
    %v286 = vmul.f32 %v268, %v279
    %v287 = vmul.f32 %v272, %v283
    %288 = vst [vmem:[#allocation2 + $0x80] sm:$0xff] %v286
    %289 = vst [vmem:[#allocation2 + $0x88] sm:$0xff] %v287
    %v290 = vld [vmem:[#allocation2] sm:$0xff]
    %v291 = vld [vmem:[#allocation2 + $0x8] sm:$0xff]
    %v292 = vld [vmem:[#allocation2 + $0x10] sm:$0xff]
    %v293 = vld [vmem:[#allocation2 + $0x18] sm:$0xff]
    %v294 = vld [vmem:[#allocation2 + $0x20] sm:$0xff]
    %v295 = vld [vmem:[#allocation2 + $0x28] sm:$0xff]
    %v296 = vld [vmem:[#allocation2 + $0x30] sm:$0xff]
    %v297 = vld [vmem:[#allocation2 + $0x38] sm:$0xff]
    %v298 = vld [vmem:[#allocation2 + $0x40] sm:$0xff]
    %v299 = vld [vmem:[#allocation2 + $0x48] sm:$0xff]
    %v300 = vld [vmem:[#allocation2 + $0x50] sm:$0xff]
    %v301 = vld [vmem:[#allocation2 + $0x58] sm:$0xff]
    %v302 = vld [vmem:[#allocation2 + $0x60] sm:$0xff]
    %v303 = vld [vmem:[#allocation2 + $0x68] sm:$0xff]
    %v304 = vld [vmem:[#allocation2 + $0x70] sm:$0xff]
    %v305 = vld [vmem:[#allocation2 + $0x78] sm:$0xff]
    %v306 = vld [vmem:[#allocation2 + $0x80] sm:$0xff]
    %v307 = vld [vmem:[#allocation2 + $0x88] sm:$0xff]
    %309 = vset.pattern.permute.xlu0 0
    %310 = vperm.xlu0 %309, %v70
    %v311 = vpop.permute.xlu0 %310
    %vm313 = vcmask 588800
    %v315 = vsel %vm313, %v69, 0
    %317 = vmatprep.subr.mxu0 %v291
    %318 = vmatpush1.msra.mxu0 %v290
    %319 = vmatprep.subr.mxu0 %v293
    %320 = vmatpush1.msra.mxu0 %v292
    %321 = vmatprep.subr.mxu0 %v295
    %322 = vmatpush1.msra.mxu0 %v294
    %323 = vmatprep.subr.mxu0 %v297
    %324 = vmatpush1.msra.mxu0 %v296
    %325 = vmatprep.subr.mxu0 %v299
    %326 = vmatpush1.msra.mxu0 %v298
    %327 = vmatprep.subr.mxu0 %v301
    %328 = vmatpush1.msra.mxu0 %v300
    %329 = vmatprep.subr.mxu0 %v303
    %330 = vmatpush1.msra.mxu0 %v302
    %331 = vmatprep.subr.mxu0 %v305
    %332 = vmatpush1.msra.mxu0 %v304
    %333 = vmatprep.subr.mxu0 %v307
    %334 = vmatpush1.msra.mxu0 %v306
    %335 = vmatprep.subr.mxu0 0.0
    %336 = vmatpush1.msra.mxu0 0.0
    %337 = vmatprep.subr.mxu0 0.0
    %338 = vmatpush1.msra.mxu0 0.0
    %339 = vmatprep.subr.mxu0 0.0
    %340 = vmatpush1.msra.mxu0 0.0
    %341 = vmatprep.subr.mxu0 0.0
    %342 = vmatpush1.msra.mxu0 0.0
    %343 = vmatprep.subr.mxu0 0.0
    %344 = vmatpush1.msra.mxu0 0.0
    %345 = vmatprep.subr.mxu0 0.0
    %346 = vmatpush1.msra.mxu0 0.0
    %347 = vmatprep.subr.mxu0 0.0
    %348 = vmatpush1.msra.mxu0 0.0
    %349 = vmatprep.subr.mxu0 0.0
    %350 = vmatpush1.msra.mxu0 0.0
    %351 = vmatprep.subr.mxu0 0.0
    %352 = vmatpush1.msra.mxu0 0.0
    %353 = vmatprep.subr.mxu0 0.0
    %354 = vmatpush1.msra.mxu0 0.0
    %355 = vmatprep.subr.mxu0 0.0
    %356 = vmatpush1.msra.mxu0 0.0
    %357 = vmatprep.subr.mxu0 0.0
    %358 = vmatpush1.msra.mxu0 0.0
    %359 = vmatprep.subr.mxu0 0.0
    %360 = vmatpush1.msra.mxu0 0.0
    %361 = vmatprep.subr.mxu0 0.0
    %362 = vmatpush1.msra.mxu0 0.0
    %363 = vmatprep.subr.mxu0 0.0
    %364 = vmatpush1.msra.mxu0 0.0
    %365 = vmatprep.subr.mxu0 0.0
    %366 = vmatpush1.msra.mxu0 0.0
    %367 = vmatprep.subr.mxu0 0.0
    %368 = vmatpush1.msra.mxu0 0.0
    %369 = vmatprep.subr.mxu0 0.0
    %370 = vmatpush1.msra.mxu0 0.0
    %371 = vmatprep.subr.mxu0 0.0
    %372 = vmatpush1.msra.mxu0 0.0
    %373 = vmatprep.subr.mxu0 0.0
    %374 = vmatpush1.msra.mxu0 0.0
    %375 = vmatprep.subr.mxu0 0.0
    %376 = vmatpush1.msra.mxu0 0.0
    %377 = vmatprep.subr.mxu0 0.0
    %378 = vmatpush1.msra.mxu0 0.0
    %379 = vmatprep.subr.mxu0 0.0
    %380 = vmatpush1.msra.mxu0 0.0
    %381 = vmatprep.mubr.f32.mxu0 0.0
    %382 = vmatmul.mubr.f32.gmra.mrb[0].mxu0 %v315
    %v383 = vpop.f32.mrb[0].mxu0
    %v384 = vadd.f32 %v311, %v383
    %v385 = vpop.f32.mrb[0].mxu0
    %v386 = vadd.f32 %v311, %v385
    %387 = vdwg.mxu0
    %v388 = vmax.f32 %v384, 0.0
    %v389 = vmax.f32 %v386, 0.0
    %v390 = vld [vmem:[%s4] sm:$0xff]
    %v391 = vld [vmem:[%s5] sm:$0xff]
    %393 = vrot.lane.b32.xlu0 %v389, 17
    %v394 = vpop.permute.xlu0 %393
    %397 = vrot.lane.b32.xlu0 %v388, 17
    %v398 = vpop.permute.xlu0 %397
    %v399 = vsel %vm78, %v398, %v394
    %v402 = vsel %vm78, %v394, %v398
    %v403 = vld [vmem:[%s1] sm:$0x3]
    %v405 = vlaneseq
    %v406 = vshrl.u32 %v405, 7
    %v407 = vsub.s32 0, %v406
    %v408 = vrot.slane %v403, %v407
    %v409 = vlaneseq
    %v410 = vshrl.u32 %v409, 7
    %v411 = vsub.s32 1, %v410
    %v412 = vrot.slane %v403, %v411
    %v415 = vmul.f32 %v402, %v408
    %v416 = vmul.f32 %v399, %v412
    %417 = vst [vmem:[#allocation2] sm:$0xff] %v415
    %418 = vst [vmem:[#allocation2 + $0x8] sm:$0xff] %v416
    %419 = vrot.lane.b32.xlu0 %v389, 16
    %v420 = vpop.permute.xlu0 %419
    %422 = vrot.lane.b32.xlu0 %v388, 16
    %v423 = vpop.permute.xlu0 %422
    %v424 = vsel %vm104, %v423, %v420
    %v427 = vsel %vm104, %v420, %v423
    %v428 = vld [vmem:[%s109] sm:$0x3]
    %v430 = vlaneseq
    %v431 = vshrl.u32 %v430, 7
    %v432 = vsub.s32 0, %v431
    %v433 = vrot.slane %v428, %v432
    %v434 = vlaneseq
    %v435 = vshrl.u32 %v434, 7
    %v436 = vsub.s32 1, %v435
    %v437 = vrot.slane %v428, %v436
    %v440 = vmul.f32 %v427, %v433
    %v441 = vmul.f32 %v424, %v437
    %442 = vst [vmem:[#allocation2 + $0x10] sm:$0xff] %v440
    %443 = vst [vmem:[#allocation2 + $0x18] sm:$0xff] %v441
    %444 = vrot.lane.b32.xlu0 %v389, 15
    %v445 = vpop.permute.xlu0 %444
    %447 = vrot.lane.b32.xlu0 %v388, 15
    %v448 = vpop.permute.xlu0 %447
    %v449 = vsel %vm131, %v448, %v445
    %v452 = vsel %vm131, %v445, %v448
    %v453 = vld [vmem:[%s136] sm:$0x3]
    %v455 = vlaneseq
    %v456 = vshrl.u32 %v455, 7
    %v457 = vsub.s32 0, %v456
    %v458 = vrot.slane %v453, %v457
    %v459 = vlaneseq
    %v460 = vshrl.u32 %v459, 7
    %v461 = vsub.s32 1, %v460
    %v462 = vrot.slane %v453, %v461
    %v465 = vmul.f32 %v452, %v458
    %v466 = vmul.f32 %v449, %v462
    %467 = vst [vmem:[#allocation2 + $0x20] sm:$0xff] %v465
    %468 = vst [vmem:[#allocation2 + $0x28] sm:$0xff] %v466
    %469 = vrot.lane.b32.xlu0 %v389, 1
    %v470 = vpop.permute.xlu0 %469
    %472 = vrot.lane.b32.xlu0 %v388, 1
    %v473 = vpop.permute.xlu0 %472
    %v474 = vsel %vm158, %v473, %v470
    %v477 = vsel %vm158, %v470, %v473
    %v478 = vld [vmem:[%s163] sm:$0x3]
    %v480 = vlaneseq
    %v481 = vshrl.u32 %v480, 7
    %v482 = vsub.s32 0, %v481
    %v483 = vrot.slane %v478, %v482
    %v484 = vlaneseq
    %v485 = vshrl.u32 %v484, 7
    %v486 = vsub.s32 1, %v485
    %v487 = vrot.slane %v478, %v486
    %v490 = vmul.f32 %v477, %v483
    %v491 = vmul.f32 %v474, %v487
    %492 = vst [vmem:[#allocation2 + $0x30] sm:$0xff] %v490
    %493 = vst [vmem:[#allocation2 + $0x38] sm:$0xff] %v491
    %494 = vst [vmem:[#allocation2 + $0x40] sm:$0xff] %v388
    %495 = vst [vmem:[#allocation2 + $0x48] sm:$0xff] %v389
    %496 = vrot.lane.b32.xlu0 %v388, 127
    %v497 = vpop.permute.xlu0 %496
    %498 = vrot.lane.b32.xlu0 %v389, 127
    %v499 = vpop.permute.xlu0 %498
    %v500 = vsel %vm186, %v497, %v499
    %v504 = vsel %vm186, %v499, %v497
    %v505 = vld [vmem:[%s192] sm:$0x3]
    %v507 = vlaneseq
    %v508 = vshrl.u32 %v507, 7
    %v509 = vsub.s32 0, %v508
    %v510 = vrot.slane %v505, %v509
    %v511 = vlaneseq
    %v512 = vshrl.u32 %v511, 7
    %v513 = vsub.s32 1, %v512
    %v514 = vrot.slane %v505, %v513
    %v517 = vmul.f32 %v500, %v510
    %v518 = vmul.f32 %v504, %v514
    %519 = vst [vmem:[#allocation2 + $0x50] sm:$0xff] %v517
    %520 = vst [vmem:[#allocation2 + $0x58] sm:$0xff] %v518
    %521 = vrot.lane.b32.xlu0 %v388, 113
    %v522 = vpop.permute.xlu0 %521
    %523 = vrot.lane.b32.xlu0 %v389, 113
    %v524 = vpop.permute.xlu0 %523
    %v525 = vsel %vm213, %v522, %v524
    %v529 = vsel %vm213, %v524, %v522
    %v530 = vld [vmem:[%s219] sm:$0x3]
    %v532 = vlaneseq
    %v533 = vshrl.u32 %v532, 7
    %v534 = vsub.s32 0, %v533
    %v535 = vrot.slane %v530, %v534
    %v536 = vlaneseq
    %v537 = vshrl.u32 %v536, 7
    %v538 = vsub.s32 1, %v537
    %v539 = vrot.slane %v530, %v538
    %v542 = vmul.f32 %v525, %v535
    %v543 = vmul.f32 %v529, %v539
    %544 = vst [vmem:[#allocation2 + $0x60] sm:$0xff] %v542
    %545 = vst [vmem:[#allocation2 + $0x68] sm:$0xff] %v543
    %546 = vrot.lane.b32.xlu0 %v388, 112
    %v547 = vpop.permute.xlu0 %546
    %548 = vrot.lane.b32.xlu0 %v389, 112
    %v549 = vpop.permute.xlu0 %548
    %v550 = vsel %vm240, %v547, %v549
    %v554 = vsel %vm240, %v549, %v547
    %v555 = vld [vmem:[%s246] sm:$0x3]
    %v557 = vlaneseq
    %v558 = vshrl.u32 %v557, 7
    %v559 = vsub.s32 0, %v558
    %v560 = vrot.slane %v555, %v559
    %v561 = vlaneseq
    %v562 = vshrl.u32 %v561, 7
    %v563 = vsub.s32 1, %v562
    %v564 = vrot.slane %v555, %v563
    %v567 = vmul.f32 %v550, %v560
    %v568 = vmul.f32 %v554, %v564
    %569 = vst [vmem:[#allocation2 + $0x70] sm:$0xff] %v567
    %570 = vst [vmem:[#allocation2 + $0x78] sm:$0xff] %v568
    %571 = vrot.lane.b32.xlu0 %v388, 111
    %v572 = vpop.permute.xlu0 %571
    %573 = vrot.lane.b32.xlu0 %v389, 111
    %v574 = vpop.permute.xlu0 %573
    %v575 = vsel %vm267, %v572, %v574
    %v579 = vsel %vm267, %v574, %v572
    %v580 = vld [vmem:[%s273] sm:$0x3]
    %v582 = vlaneseq
    %v583 = vshrl.u32 %v582, 7
    %v584 = vsub.s32 0, %v583
    %v585 = vrot.slane %v580, %v584
    %v586 = vlaneseq
    %v587 = vshrl.u32 %v586, 7
    %v588 = vsub.s32 1, %v587
    %v589 = vrot.slane %v580, %v588
    %v592 = vmul.f32 %v575, %v585
    %v593 = vmul.f32 %v579, %v589
    %594 = vst [vmem:[#allocation2 + $0x80] sm:$0xff] %v592
    %595 = vst [vmem:[#allocation2 + $0x88] sm:$0xff] %v593
    %v596 = vld [vmem:[#allocation2] sm:$0xff]
    %v597 = vld [vmem:[#allocation2 + $0x8] sm:$0xff]
    %v598 = vld [vmem:[#allocation2 + $0x10] sm:$0xff]
    %v599 = vld [vmem:[#allocation2 + $0x18] sm:$0xff]
    %v600 = vld [vmem:[#allocation2 + $0x20] sm:$0xff]
    %v601 = vld [vmem:[#allocation2 + $0x28] sm:$0xff]
    %v602 = vld [vmem:[#allocation2 + $0x30] sm:$0xff]
    %v603 = vld [vmem:[#allocation2 + $0x38] sm:$0xff]
    %v604 = vld [vmem:[#allocation2 + $0x40] sm:$0xff]
    %v605 = vld [vmem:[#allocation2 + $0x48] sm:$0xff]
    %v606 = vld [vmem:[#allocation2 + $0x50] sm:$0xff]
    %v607 = vld [vmem:[#allocation2 + $0x58] sm:$0xff]
    %v608 = vld [vmem:[#allocation2 + $0x60] sm:$0xff]
    %v609 = vld [vmem:[#allocation2 + $0x68] sm:$0xff]
    %v610 = vld [vmem:[#allocation2 + $0x70] sm:$0xff]
    %v611 = vld [vmem:[#allocation2 + $0x78] sm:$0xff]
    %v612 = vld [vmem:[#allocation2 + $0x80] sm:$0xff]
    %v613 = vld [vmem:[#allocation2 + $0x88] sm:$0xff]
    %615 = vset.pattern.permute.xlu0 0
    %616 = vperm.xlu0 %615, %v391
    %v617 = vpop.permute.xlu0 %616
    %v620 = vsel %vm313, %v390, 0
    %622 = vmatprep.subr.mxu0 %v597
    %623 = vmatpush1.msra.mxu0 %v596
    %624 = vmatprep.subr.mxu0 %v599
    %625 = vmatpush1.msra.mxu0 %v598
    %626 = vmatprep.subr.mxu0 %v601
    %627 = vmatpush1.msra.mxu0 %v600
    %628 = vmatprep.subr.mxu0 %v603
    %629 = vmatpush1.msra.mxu0 %v602
    %630 = vmatprep.subr.mxu0 %v605
    %631 = vmatpush1.msra.mxu0 %v604
    %632 = vmatprep.subr.mxu0 %v607
    %633 = vmatpush1.msra.mxu0 %v606
    %634 = vmatprep.subr.mxu0 %v609
    %635 = vmatpush1.msra.mxu0 %v608
    %636 = vmatprep.subr.mxu0 %v611
    %637 = vmatpush1.msra.mxu0 %v610
    %638 = vmatprep.subr.mxu0 %v613
    %639 = vmatpush1.msra.mxu0 %v612
    %640 = vmatprep.subr.mxu0 0.0
    %641 = vmatpush1.msra.mxu0 0.0
    %642 = vmatprep.subr.mxu0 0.0
    %643 = vmatpush1.msra.mxu0 0.0
    %644 = vmatprep.subr.mxu0 0.0
    %645 = vmatpush1.msra.mxu0 0.0
    %646 = vmatprep.subr.mxu0 0.0
    %647 = vmatpush1.msra.mxu0 0.0
    %648 = vmatprep.subr.mxu0 0.0
    %649 = vmatpush1.msra.mxu0 0.0
    %650 = vmatprep.subr.mxu0 0.0
    %651 = vmatpush1.msra.mxu0 0.0
    %652 = vmatprep.subr.mxu0 0.0
    %653 = vmatpush1.msra.mxu0 0.0
    %654 = vmatprep.subr.mxu0 0.0
    %655 = vmatpush1.msra.mxu0 0.0
    %656 = vmatprep.subr.mxu0 0.0
    %657 = vmatpush1.msra.mxu0 0.0
    %658 = vmatprep.subr.mxu0 0.0
    %659 = vmatpush1.msra.mxu0 0.0
    %660 = vmatprep.subr.mxu0 0.0
    %661 = vmatpush1.msra.mxu0 0.0
    %662 = vmatprep.subr.mxu0 0.0
    %663 = vmatpush1.msra.mxu0 0.0
    %664 = vmatprep.subr.mxu0 0.0
    %665 = vmatpush1.msra.mxu0 0.0
    %666 = vmatprep.subr.mxu0 0.0
    %667 = vmatpush1.msra.mxu0 0.0
    %668 = vmatprep.subr.mxu0 0.0
    %669 = vmatpush1.msra.mxu0 0.0
    %670 = vmatprep.subr.mxu0 0.0
    %671 = vmatpush1.msra.mxu0 0.0
    %672 = vmatprep.subr.mxu0 0.0
    %673 = vmatpush1.msra.mxu0 0.0
    %674 = vmatprep.subr.mxu0 0.0
    %675 = vmatpush1.msra.mxu0 0.0
    %676 = vmatprep.subr.mxu0 0.0
    %677 = vmatpush1.msra.mxu0 0.0
    %678 = vmatprep.subr.mxu0 0.0
    %679 = vmatpush1.msra.mxu0 0.0
    %680 = vmatprep.subr.mxu0 0.0
    %681 = vmatpush1.msra.mxu0 0.0
    %682 = vmatprep.subr.mxu0 0.0
    %683 = vmatpush1.msra.mxu0 0.0
    %684 = vmatprep.subr.mxu0 0.0
    %685 = vmatpush1.msra.mxu0 0.0
    %686 = vmatprep.mubr.f32.mxu0 0.0
    %687 = vmatmul.mubr.f32.gmra.mrb[0].mxu0 %v620
    %v688 = vpop.f32.mrb[0].mxu0
    %v689 = vadd.f32 %v617, %v688
    %v690 = vpop.f32.mrb[0].mxu0
    %v691 = vadd.f32 %v617, %v690
    %692 = vdwg.mxu0
    %v693 = vmax.f32 %v689, 0.0
    %v694 = vmax.f32 %v691, 0.0
    %s695 = scalar_lea.vmem %s4, 8
    %v696 = vld [vmem:[%s695] sm:$0xff]
    %s697 = scalar_lea.vmem %s5, 8
    %v698 = vld [vmem:[%s697] sm:$0xff]
    %700 = vrot.lane.b32.xlu0 %v694, 17
    %v701 = vpop.permute.xlu0 %700
    %704 = vrot.lane.b32.xlu0 %v693, 17
    %v705 = vpop.permute.xlu0 %704
    %v706 = vsel %vm78, %v705, %v701
    %v709 = vsel %vm78, %v701, %v705
    %v710 = vld [vmem:[%s1] sm:$0x3]
    %v712 = vlaneseq
    %v713 = vshrl.u32 %v712, 7
    %v714 = vsub.s32 0, %v713
    %v715 = vrot.slane %v710, %v714
    %v716 = vlaneseq
    %v717 = vshrl.u32 %v716, 7
    %v718 = vsub.s32 1, %v717
    %v719 = vrot.slane %v710, %v718
    %v722 = vmul.f32 %v709, %v715
    %v723 = vmul.f32 %v706, %v719
    %724 = vst [vmem:[#allocation2] sm:$0xff] %v722
    %725 = vst [vmem:[#allocation2 + $0x8] sm:$0xff] %v723
    %726 = vrot.lane.b32.xlu0 %v694, 16
    %v727 = vpop.permute.xlu0 %726
    %729 = vrot.lane.b32.xlu0 %v693, 16
    %v730 = vpop.permute.xlu0 %729
    %v731 = vsel %vm104, %v730, %v727
    %v734 = vsel %vm104, %v727, %v730
    %v735 = vld [vmem:[%s109] sm:$0x3]
    %v737 = vlaneseq
    %v738 = vshrl.u32 %v737, 7
    %v739 = vsub.s32 0, %v738
    %v740 = vrot.slane %v735, %v739
    %v741 = vlaneseq
    %v742 = vshrl.u32 %v741, 7
    %v743 = vsub.s32 1, %v742
    %v744 = vrot.slane %v735, %v743
    %v747 = vmul.f32 %v734, %v740
    %v748 = vmul.f32 %v731, %v744
    %749 = vst [vmem:[#allocation2 + $0x10] sm:$0xff] %v747
    %750 = vst [vmem:[#allocation2 + $0x18] sm:$0xff] %v748
    %751 = vrot.lane.b32.xlu0 %v694, 15
    %v752 = vpop.permute.xlu0 %751
    %754 = vrot.lane.b32.xlu0 %v693, 15
    %v755 = vpop.permute.xlu0 %754
    %v756 = vsel %vm131, %v755, %v752
    %v759 = vsel %vm131, %v752, %v755
    %v760 = vld [vmem:[%s136] sm:$0x3]
    %v762 = vlaneseq
    %v763 = vshrl.u32 %v762, 7
    %v764 = vsub.s32 0, %v763
    %v765 = vrot.slane %v760, %v764
    %v766 = vlaneseq
    %v767 = vshrl.u32 %v766, 7
    %v768 = vsub.s32 1, %v767
    %v769 = vrot.slane %v760, %v768
    %v772 = vmul.f32 %v759, %v765
    %v773 = vmul.f32 %v756, %v769
    %774 = vst [vmem:[#allocation2 + $0x20] sm:$0xff] %v772
    %775 = vst [vmem:[#allocation2 + $0x28] sm:$0xff] %v773
    %776 = vrot.lane.b32.xlu0 %v694, 1
    %v777 = vpop.permute.xlu0 %776
    %779 = vrot.lane.b32.xlu0 %v693, 1
    %v780 = vpop.permute.xlu0 %779
    %v781 = vsel %vm158, %v780, %v777
    %v784 = vsel %vm158, %v777, %v780
    %v785 = vld [vmem:[%s163] sm:$0x3]
    %v787 = vlaneseq
    %v788 = vshrl.u32 %v787, 7
    %v789 = vsub.s32 0, %v788
    %v790 = vrot.slane %v785, %v789
    %v791 = vlaneseq
    %v792 = vshrl.u32 %v791, 7
    %v793 = vsub.s32 1, %v792
    %v794 = vrot.slane %v785, %v793
    %v797 = vmul.f32 %v784, %v790
    %v798 = vmul.f32 %v781, %v794
    %799 = vst [vmem:[#allocation2 + $0x30] sm:$0xff] %v797
    %800 = vst [vmem:[#allocation2 + $0x38] sm:$0xff] %v798
    %801 = vst [vmem:[#allocation2 + $0x40] sm:$0xff] %v693
    %802 = vst [vmem:[#allocation2 + $0x48] sm:$0xff] %v694
    %803 = vrot.lane.b32.xlu0 %v693, 127
    %v804 = vpop.permute.xlu0 %803
    %805 = vrot.lane.b32.xlu0 %v694, 127
    %v806 = vpop.permute.xlu0 %805
    %v807 = vsel %vm186, %v804, %v806
    %v811 = vsel %vm186, %v806, %v804
    %v812 = vld [vmem:[%s192] sm:$0x3]
    %v814 = vlaneseq
    %v815 = vshrl.u32 %v814, 7
    %v816 = vsub.s32 0, %v815
    %v817 = vrot.slane %v812, %v816
    %v818 = vlaneseq
    %v819 = vshrl.u32 %v818, 7
    %v820 = vsub.s32 1, %v819
    %v821 = vrot.slane %v812, %v820
    %v824 = vmul.f32 %v807, %v817
    %v825 = vmul.f32 %v811, %v821
    %826 = vst [vmem:[#allocation2 + $0x50] sm:$0xff] %v824
    %827 = vst [vmem:[#allocation2 + $0x58] sm:$0xff] %v825
    %828 = vrot.lane.b32.xlu0 %v693, 113
    %v829 = vpop.permute.xlu0 %828
    %830 = vrot.lane.b32.xlu0 %v694, 113
    %v831 = vpop.permute.xlu0 %830
    %v832 = vsel %vm213, %v829, %v831
    %v836 = vsel %vm213, %v831, %v829
    %v837 = vld [vmem:[%s219] sm:$0x3]
    %v839 = vlaneseq
    %v840 = vshrl.u32 %v839, 7
    %v841 = vsub.s32 0, %v840
    %v842 = vrot.slane %v837, %v841
    %v843 = vlaneseq
    %v844 = vshrl.u32 %v843, 7
    %v845 = vsub.s32 1, %v844
    %v846 = vrot.slane %v837, %v845
    %v849 = vmul.f32 %v832, %v842
    %v850 = vmul.f32 %v836, %v846
    %851 = vst [vmem:[#allocation2 + $0x60] sm:$0xff] %v849
    %852 = vst [vmem:[#allocation2 + $0x68] sm:$0xff] %v850
    %853 = vrot.lane.b32.xlu0 %v693, 112
    %v854 = vpop.permute.xlu0 %853
    %855 = vrot.lane.b32.xlu0 %v694, 112
    %v856 = vpop.permute.xlu0 %855
    %v857 = vsel %vm240, %v854, %v856
    %v861 = vsel %vm240, %v856, %v854
    %v862 = vld [vmem:[%s246] sm:$0x3]
    %v864 = vlaneseq
    %v865 = vshrl.u32 %v864, 7
    %v866 = vsub.s32 0, %v865
    %v867 = vrot.slane %v862, %v866
    %v868 = vlaneseq
    %v869 = vshrl.u32 %v868, 7
    %v870 = vsub.s32 1, %v869
    %v871 = vrot.slane %v862, %v870
    %v874 = vmul.f32 %v857, %v867
    %v875 = vmul.f32 %v861, %v871
    %876 = vst [vmem:[#allocation2 + $0x70] sm:$0xff] %v874
    %877 = vst [vmem:[#allocation2 + $0x78] sm:$0xff] %v875
    %878 = vrot.lane.b32.xlu0 %v693, 111
    %v879 = vpop.permute.xlu0 %878
    %880 = vrot.lane.b32.xlu0 %v694, 111
    %v881 = vpop.permute.xlu0 %880
    %v882 = vsel %vm267, %v879, %v881
    %v886 = vsel %vm267, %v881, %v879
    %v887 = vld [vmem:[%s273] sm:$0x3]
    %v889 = vlaneseq
    %v890 = vshrl.u32 %v889, 7
    %v891 = vsub.s32 0, %v890
    %v892 = vrot.slane %v887, %v891
    %v893 = vlaneseq
    %v894 = vshrl.u32 %v893, 7
    %v895 = vsub.s32 1, %v894
    %v896 = vrot.slane %v887, %v895
    %v899 = vmul.f32 %v882, %v892
    %v900 = vmul.f32 %v886, %v896
    %901 = vst [vmem:[#allocation2 + $0x80] sm:$0xff] %v899
    %902 = vst [vmem:[#allocation2 + $0x88] sm:$0xff] %v900
    %v903 = vld [vmem:[#allocation2] sm:$0xff]
    %v904 = vld [vmem:[#allocation2 + $0x8] sm:$0xff]
    %v905 = vld [vmem:[#allocation2 + $0x10] sm:$0xff]
    %v906 = vld [vmem:[#allocation2 + $0x18] sm:$0xff]
    %v907 = vld [vmem:[#allocation2 + $0x20] sm:$0xff]
    %v908 = vld [vmem:[#allocation2 + $0x28] sm:$0xff]
    %v909 = vld [vmem:[#allocation2 + $0x30] sm:$0xff]
    %v910 = vld [vmem:[#allocation2 + $0x38] sm:$0xff]
    %v911 = vld [vmem:[#allocation2 + $0x40] sm:$0xff]
    %v912 = vld [vmem:[#allocation2 + $0x48] sm:$0xff]
    %v913 = vld [vmem:[#allocation2 + $0x50] sm:$0xff]
    %v914 = vld [vmem:[#allocation2 + $0x58] sm:$0xff]
    %v915 = vld [vmem:[#allocation2 + $0x60] sm:$0xff]
    %v916 = vld [vmem:[#allocation2 + $0x68] sm:$0xff]
    %v917 = vld [vmem:[#allocation2 + $0x70] sm:$0xff]
    %v918 = vld [vmem:[#allocation2 + $0x78] sm:$0xff]
    %v919 = vld [vmem:[#allocation2 + $0x80] sm:$0xff]
    %v920 = vld [vmem:[#allocation2 + $0x88] sm:$0xff]
    %922 = vset.pattern.permute.xlu0 0
    %923 = vperm.xlu0 %922, %v698
    %v924 = vpop.permute.xlu0 %923
    %v927 = vsel %vm313, %v696, 0
    %929 = vmatprep.subr.mxu0 %v904
    %930 = vmatpush1.msra.mxu0 %v903
    %931 = vmatprep.subr.mxu0 %v906
    %932 = vmatpush1.msra.mxu0 %v905
    %933 = vmatprep.subr.mxu0 %v908
    %934 = vmatpush1.msra.mxu0 %v907
    %935 = vmatprep.subr.mxu0 %v910
    %936 = vmatpush1.msra.mxu0 %v909
    %937 = vmatprep.subr.mxu0 %v912
    %938 = vmatpush1.msra.mxu0 %v911
    %939 = vmatprep.subr.mxu0 %v914
    %940 = vmatpush1.msra.mxu0 %v913
    %941 = vmatprep.subr.mxu0 %v916
    %942 = vmatpush1.msra.mxu0 %v915
    %943 = vmatprep.subr.mxu0 %v918
    %944 = vmatpush1.msra.mxu0 %v917
    %945 = vmatprep.subr.mxu0 %v920
    %946 = vmatpush1.msra.mxu0 %v919
    %947 = vmatprep.subr.mxu0 0.0
    %948 = vmatpush1.msra.mxu0 0.0
    %949 = vmatprep.subr.mxu0 0.0
    %950 = vmatpush1.msra.mxu0 0.0
    %951 = vmatprep.subr.mxu0 0.0
    %952 = vmatpush1.msra.mxu0 0.0
    %953 = vmatprep.subr.mxu0 0.0
    %954 = vmatpush1.msra.mxu0 0.0
    %955 = vmatprep.subr.mxu0 0.0
    %956 = vmatpush1.msra.mxu0 0.0
    %957 = vmatprep.subr.mxu0 0.0
    %958 = vmatpush1.msra.mxu0 0.0
    %959 = vmatprep.subr.mxu0 0.0
    %960 = vmatpush1.msra.mxu0 0.0
    %961 = vmatprep.subr.mxu0 0.0
    %962 = vmatpush1.msra.mxu0 0.0
    %963 = vmatprep.subr.mxu0 0.0
    %964 = vmatpush1.msra.mxu0 0.0
    %965 = vmatprep.subr.mxu0 0.0
    %966 = vmatpush1.msra.mxu0 0.0
    %967 = vmatprep.subr.mxu0 0.0
    %968 = vmatpush1.msra.mxu0 0.0
    %969 = vmatprep.subr.mxu0 0.0
    %970 = vmatpush1.msra.mxu0 0.0
    %971 = vmatprep.subr.mxu0 0.0
    %972 = vmatpush1.msra.mxu0 0.0
    %973 = vmatprep.subr.mxu0 0.0
    %974 = vmatpush1.msra.mxu0 0.0
    %975 = vmatprep.subr.mxu0 0.0
    %976 = vmatpush1.msra.mxu0 0.0
    %977 = vmatprep.subr.mxu0 0.0
    %978 = vmatpush1.msra.mxu0 0.0
    %979 = vmatprep.subr.mxu0 0.0
    %980 = vmatpush1.msra.mxu0 0.0
    %981 = vmatprep.subr.mxu0 0.0
    %982 = vmatpush1.msra.mxu0 0.0
    %983 = vmatprep.subr.mxu0 0.0
    %984 = vmatpush1.msra.mxu0 0.0
    %985 = vmatprep.subr.mxu0 0.0
    %986 = vmatpush1.msra.mxu0 0.0
    %987 = vmatprep.subr.mxu0 0.0
    %988 = vmatpush1.msra.mxu0 0.0
    %989 = vmatprep.subr.mxu0 0.0
    %990 = vmatpush1.msra.mxu0 0.0
    %991 = vmatprep.subr.mxu0 0.0
    %992 = vmatpush1.msra.mxu0 0.0
    %993 = vmatprep.mubr.f32.mxu0 0.0
    %994 = vmatmul.mubr.f32.gmra.mrb[0].mxu0 %v927
    %v995 = vpop.f32.mrb[0].mxu0
    %v996 = vadd.f32 %v924, %v995
    %v997 = vpop.f32.mrb[0].mxu0
    %v998 = vadd.f32 %v924, %v997
    %999 = vdwg.mxu0
    %v1000 = vmax.f32 %v996, 0.0
    %v1001 = vmax.f32 %v998, 0.0
    %v1002 = vpack.c.bf16 %v1000, %v1000
    %v1003 = vpack.c.bf16 %v1001, %v1001
    %v1004 = vld [vmem:[#allocation8] sm:$0xff]
    %v1005 = vld [vmem:[#allocation8 + $0x8] sm:$0xff]
    %v1006 = vld [vmem:[#allocation8 + $0x10] sm:$0xff]
    %v1007 = vld [vmem:[#allocation8 + $0x18] sm:$0xff]
    %v1008 = vld [vmem:[#allocation8 + $0x20] sm:$0xff]
    %v1009 = vld [vmem:[#allocation8 + $0x28] sm:$0xff]
    %v1010 = vld [vmem:[#allocation8 + $0x30] sm:$0xff]
    %v1011 = vld [vmem:[#allocation8 + $0x38] sm:$0xff]
    %v1012 = vld [vmem:[#allocation8 + $0x40] sm:$0xff]
    %v1013 = vld [vmem:[#allocation8 + $0x48] sm:$0xff]
    %v1014 = vld [vmem:[#allocation8 + $0x50] sm:$0xff]
    %v1015 = vld [vmem:[#allocation8 + $0x58] sm:$0xff]
    %v1016 = vld [vmem:[#allocation8 + $0x60] sm:$0xff]
    %v1017 = vld [vmem:[#allocation8 + $0x68] sm:$0xff]
    %v1018 = vld [vmem:[#allocation8 + $0x70] sm:$0xff]
    %v1019 = vld [vmem:[#allocation8 + $0x78] sm:$0xff]
    %v1020 = vld [vmem:[#allocation8 + $0x80] sm:$0xff]
    %v1021 = vld [vmem:[#allocation8 + $0x88] sm:$0xff]
    %v1022 = vld [vmem:[#allocation8 + $0x90] sm:$0xff]
    %v1023 = vld [vmem:[#allocation8 + $0x98] sm:$0xff]
    %v1024 = vld [vmem:[#allocation8 + $0xa0] sm:$0xff]
    %v1025 = vld [vmem:[#allocation8 + $0xa8] sm:$0xff]
    %v1026 = vld [vmem:[#allocation8 + $0xb0] sm:$0xff]
    %v1027 = vld [vmem:[#allocation8 + $0xb8] sm:$0xff]
    %v1028 = vld [vmem:[#allocation8 + $0xc0] sm:$0xff]
    %v1029 = vld [vmem:[#allocation8 + $0xc8] sm:$0xff]
    %v1030 = vld [vmem:[#allocation8 + $0xd0] sm:$0xff]
    %v1031 = vld [vmem:[#allocation8 + $0xd8] sm:$0xff]
    %v1032 = vld [vmem:[#allocation8 + $0xe0] sm:$0xff]
    %v1033 = vld [vmem:[#allocation8 + $0xe8] sm:$0xff]
    %v1034 = vld [vmem:[#allocation8 + $0xf0] sm:$0xff]
    %v1035 = vld [vmem:[#allocation8 + $0xf8] sm:$0xff]
    %s1036 = scalar_lea.vmem [#allocation8], 256
    %v1037 = vld [vmem:[%s1036] sm:$0xff]
    %v1038 = vld [vmem:[%s1036 + $0x8] sm:$0xff]
    %v1039 = vld [vmem:[%s1036 + $0x10] sm:$0xff]
    %v1040 = vld [vmem:[%s1036 + $0x18] sm:$0xff]
    %v1041 = vld [vmem:[%s1036 + $0x20] sm:$0xff]
    %v1042 = vld [vmem:[%s1036 + $0x28] sm:$0xff]
    %v1043 = vld [vmem:[%s1036 + $0x30] sm:$0xff]
    %v1044 = vld [vmem:[%s1036 + $0x38] sm:$0xff]
    %v1045 = vld [vmem:[%s1036 + $0x40] sm:$0xff]
    %v1046 = vld [vmem:[%s1036 + $0x48] sm:$0xff]
    %v1047 = vld [vmem:[%s1036 + $0x50] sm:$0xff]
    %v1048 = vld [vmem:[%s1036 + $0x58] sm:$0xff]
    %v1049 = vld [vmem:[%s1036 + $0x60] sm:$0xff]
    %v1050 = vld [vmem:[%s1036 + $0x68] sm:$0xff]
    %v1051 = vld [vmem:[%s1036 + $0x70] sm:$0xff]
    %v1052 = vld [vmem:[%s1036 + $0x78] sm:$0xff]
    %v1053 = vld [vmem:[%s1036 + $0x80] sm:$0xff]
    %v1054 = vld [vmem:[%s1036 + $0x88] sm:$0xff]
    %v1055 = vld [vmem:[%s1036 + $0x90] sm:$0xff]
    %v1056 = vld [vmem:[%s1036 + $0x98] sm:$0xff]
    %v1057 = vld [vmem:[%s1036 + $0xa0] sm:$0xff]
    %v1058 = vld [vmem:[%s1036 + $0xa8] sm:$0xff]
    %v1059 = vld [vmem:[%s1036 + $0xb0] sm:$0xff]
    %v1060 = vld [vmem:[%s1036 + $0xb8] sm:$0xff]
    %v1061 = vld [vmem:[%s1036 + $0xc0] sm:$0xff]
    %v1062 = vld [vmem:[%s1036 + $0xc8] sm:$0xff]
    %v1063 = vld [vmem:[%s1036 + $0xd0] sm:$0xff]
    %v1064 = vld [vmem:[%s1036 + $0xd8] sm:$0xff]
    %v1065 = vld [vmem:[%s1036 + $0xe0] sm:$0xff]
    %v1066 = vld [vmem:[%s1036 + $0xe8] sm:$0xff]
    %v1067 = vld [vmem:[%s1036 + $0xf0] sm:$0xff]
    %v1068 = vld [vmem:[%s1036 + $0xf8] sm:$0xff]
    %v1071 = vrot.slane %v1002, 1
    %v1072 = vrot.slane %v1003, 1
    %v1107 = vunpack.c.l.b16 %v1037
    %v1108 = vunpack.c.h.b16 %v1037
    %v1109 = vunpack.c.l.b16 %v1038
    %v1110 = vunpack.c.h.b16 %v1038
    %v1111 = vunpack.c.l.b16 %v1039
    %v1112 = vunpack.c.h.b16 %v1039
    %v1113 = vunpack.c.l.b16 %v1040
    %v1114 = vunpack.c.h.b16 %v1040
    %v1115 = vunpack.c.l.b16 %v1041
    %v1116 = vunpack.c.h.b16 %v1041
    %v1117 = vunpack.c.l.b16 %v1042
    %v1118 = vunpack.c.h.b16 %v1042
    %v1119 = vunpack.c.l.b16 %v1043
    %v1120 = vunpack.c.h.b16 %v1043
    %v1121 = vunpack.c.l.b16 %v1044
    %v1122 = vunpack.c.h.b16 %v1044
    %v1123 = vunpack.c.l.b16 %v1045
    %v1124 = vunpack.c.h.b16 %v1045
    %v1125 = vunpack.c.l.b16 %v1046
    %v1126 = vunpack.c.h.b16 %v1046
    %v1127 = vunpack.c.l.b16 %v1047
    %v1128 = vunpack.c.h.b16 %v1047
    %v1129 = vunpack.c.l.b16 %v1048
    %v1130 = vunpack.c.h.b16 %v1048
    %v1131 = vunpack.c.l.b16 %v1049
    %v1132 = vunpack.c.h.b16 %v1049
    %v1133 = vunpack.c.l.b16 %v1050
    %v1134 = vunpack.c.h.b16 %v1050
    %v1135 = vunpack.c.l.b16 %v1051
    %v1136 = vunpack.c.h.b16 %v1051
    %v1137 = vunpack.c.l.b16 %v1052
    %v1138 = vunpack.c.h.b16 %v1052
    %v1139 = vunpack.c.l.b16 %v1053
    %v1140 = vunpack.c.h.b16 %v1053
    %v1141 = vunpack.c.l.b16 %v1054
    %v1142 = vunpack.c.h.b16 %v1054
    %v1143 = vunpack.c.l.b16 %v1055
    %v1144 = vunpack.c.h.b16 %v1055
    %v1145 = vunpack.c.l.b16 %v1056
    %v1146 = vunpack.c.h.b16 %v1056
    %v1147 = vunpack.c.l.b16 %v1057
    %v1148 = vunpack.c.h.b16 %v1057
    %v1149 = vunpack.c.l.b16 %v1058
    %v1150 = vunpack.c.h.b16 %v1058
    %v1151 = vunpack.c.l.b16 %v1059
    %v1152 = vunpack.c.h.b16 %v1059
    %v1153 = vunpack.c.l.b16 %v1060
    %v1154 = vunpack.c.h.b16 %v1060
    %v1155 = vunpack.c.l.b16 %v1061
    %v1156 = vunpack.c.h.b16 %v1061
    %v1157 = vunpack.c.l.b16 %v1062
    %v1158 = vunpack.c.h.b16 %v1062
    %v1159 = vunpack.c.l.b16 %v1063
    %v1160 = vunpack.c.h.b16 %v1063
    %v1161 = vunpack.c.l.b16 %v1064
    %v1162 = vunpack.c.h.b16 %v1064
    %v1163 = vunpack.c.l.b16 %v1065
    %v1164 = vunpack.c.h.b16 %v1065
    %v1165 = vunpack.c.l.b16 %v1066
    %v1166 = vunpack.c.h.b16 %v1066
    %v1167 = vunpack.c.l.b16 %v1067
    %v1168 = vunpack.c.h.b16 %v1067
    %v1169 = vunpack.c.l.b16 %v1068
    %v1170 = vunpack.c.h.b16 %v1068
    %v1171 = vpack.c.b16 %v1109, %v1107
    %v1172 = vpack.c.b16 %v1110, %v1108
    %v1173 = vpack.c.b16 %v1113, %v1111
    %v1174 = vpack.c.b16 %v1114, %v1112
    %v1175 = vpack.c.b16 %v1117, %v1115
    %v1176 = vpack.c.b16 %v1118, %v1116
    %v1177 = vpack.c.b16 %v1121, %v1119
    %v1178 = vpack.c.b16 %v1122, %v1120
    %v1179 = vpack.c.b16 %v1125, %v1123
    %v1180 = vpack.c.b16 %v1126, %v1124
    %v1181 = vpack.c.b16 %v1129, %v1127
    %v1182 = vpack.c.b16 %v1130, %v1128
    %v1183 = vpack.c.b16 %v1133, %v1131
    %v1184 = vpack.c.b16 %v1134, %v1132
    %v1185 = vpack.c.b16 %v1137, %v1135
    %v1186 = vpack.c.b16 %v1138, %v1136
    %v1187 = vpack.c.b16 %v1141, %v1139
    %v1188 = vpack.c.b16 %v1142, %v1140
    %v1189 = vpack.c.b16 %v1145, %v1143
    %v1190 = vpack.c.b16 %v1146, %v1144
    %v1191 = vpack.c.b16 %v1149, %v1147
    %v1192 = vpack.c.b16 %v1150, %v1148
    %v1193 = vpack.c.b16 %v1153, %v1151
    %v1194 = vpack.c.b16 %v1154, %v1152
    %v1195 = vpack.c.b16 %v1157, %v1155
    %v1196 = vpack.c.b16 %v1158, %v1156
    %v1197 = vpack.c.b16 %v1161, %v1159
    %v1198 = vpack.c.b16 %v1162, %v1160
    %v1199 = vpack.c.b16 %v1165, %v1163
    %v1200 = vpack.c.b16 %v1166, %v1164
    %v1201 = vpack.c.b16 %v1169, %v1167
    %v1202 = vpack.c.b16 %v1170, %v1168
    %1235 = vmatprep.subr.bf16.mxu0 %v1172
    %1236 = vmatpush1.bf16.msra.mxu0 %v1171
    %1237 = vmatprep.subr.bf16.mxu0 %v1174
    %1238 = vmatpush1.bf16.msra.mxu0 %v1173
    %1239 = vmatprep.subr.bf16.mxu0 %v1176
    %1240 = vmatpush1.bf16.msra.mxu0 %v1175
    %1241 = vmatprep.subr.bf16.mxu0 %v1178
    %1242 = vmatpush1.bf16.msra.mxu0 %v1177
    %1243 = vmatprep.subr.bf16.mxu0 %v1180
    %1244 = vmatpush1.bf16.msra.mxu0 %v1179
    %1245 = vmatprep.subr.bf16.mxu0 %v1182
    %1246 = vmatpush1.bf16.msra.mxu0 %v1181
    %1247 = vmatprep.subr.bf16.mxu0 %v1184
    %1248 = vmatpush1.bf16.msra.mxu0 %v1183
    %1249 = vmatprep.subr.bf16.mxu0 %v1186
    %1250 = vmatpush1.bf16.msra.mxu0 %v1185
    %1251 = vmatprep.subr.bf16.mxu0 %v1188
    %1252 = vmatpush1.bf16.msra.mxu0 %v1187
    %1253 = vmatprep.subr.bf16.mxu0 %v1190
    %1254 = vmatpush1.bf16.msra.mxu0 %v1189
    %1255 = vmatprep.subr.bf16.mxu0 %v1192
    %1256 = vmatpush1.bf16.msra.mxu0 %v1191
    %1257 = vmatprep.subr.bf16.mxu0 %v1194
    %1258 = vmatpush1.bf16.msra.mxu0 %v1193
    %1259 = vmatprep.subr.bf16.mxu0 %v1196
    %1260 = vmatpush1.bf16.msra.mxu0 %v1195
    %1261 = vmatprep.subr.bf16.mxu0 %v1198
    %1262 = vmatpush1.bf16.msra.mxu0 %v1197
    %1263 = vmatprep.subr.bf16.mxu0 %v1200
    %1264 = vmatpush1.bf16.msra.mxu0 %v1199
    %1265 = vmatprep.subr.bf16.mxu0 %v1202
    %1266 = vmatpush1.bf16.msra.mxu0 %v1201
    %1267 = vmatprep.mubr.bf16.mxu0 %v1072
    %1268 = vmatmul.mubr.bf16.gmra.mrb[0].mxu0 %v1071
    %v1269 = vpop.f32.mrb[0].mxu0
    %v1270 = vadd.f32 0.0, %v1269
    %v1271 = vpop.f32.mrb[0].mxu0
    %v1272 = vadd.f32 0.0, %v1271
    %v1273 = vpop.f32.mrb[0].mxu0
    %v1274 = vpop.f32.mrb[0].mxu0
    %1275 = vdwg.mxu0
    %v1308 = vunpack.c.l.b16 %v1004
    %v1309 = vunpack.c.h.b16 %v1004
    %v1310 = vunpack.c.l.b16 %v1005
    %v1311 = vunpack.c.h.b16 %v1005
    %v1312 = vunpack.c.l.b16 %v1006
    %v1313 = vunpack.c.h.b16 %v1006
    %v1314 = vunpack.c.l.b16 %v1007
    %v1315 = vunpack.c.h.b16 %v1007
    %v1316 = vunpack.c.l.b16 %v1008
    %v1317 = vunpack.c.h.b16 %v1008
    %v1318 = vunpack.c.l.b16 %v1009
    %v1319 = vunpack.c.h.b16 %v1009
    %v1320 = vunpack.c.l.b16 %v1010
    %v1321 = vunpack.c.h.b16 %v1010
    %v1322 = vunpack.c.l.b16 %v1011
    %v1323 = vunpack.c.h.b16 %v1011
    %v1324 = vunpack.c.l.b16 %v1012
    %v1325 = vunpack.c.h.b16 %v1012
    %v1326 = vunpack.c.l.b16 %v1013
    %v1327 = vunpack.c.h.b16 %v1013
    %v1328 = vunpack.c.l.b16 %v1014
    %v1329 = vunpack.c.h.b16 %v1014
    %v1330 = vunpack.c.l.b16 %v1015
    %v1331 = vunpack.c.h.b16 %v1015
    %v1332 = vunpack.c.l.b16 %v1016
    %v1333 = vunpack.c.h.b16 %v1016
    %v1334 = vunpack.c.l.b16 %v1017
    %v1335 = vunpack.c.h.b16 %v1017
    %v1336 = vunpack.c.l.b16 %v1018
    %v1337 = vunpack.c.h.b16 %v1018
    %v1338 = vunpack.c.l.b16 %v1019
    %v1339 = vunpack.c.h.b16 %v1019
    %v1340 = vunpack.c.l.b16 %v1020
    %v1341 = vunpack.c.h.b16 %v1020
    %v1342 = vunpack.c.l.b16 %v1021
    %v1343 = vunpack.c.h.b16 %v1021
    %v1344 = vunpack.c.l.b16 %v1022
    %v1345 = vunpack.c.h.b16 %v1022
    %v1346 = vunpack.c.l.b16 %v1023
    %v1347 = vunpack.c.h.b16 %v1023
    %v1348 = vunpack.c.l.b16 %v1024
    %v1349 = vunpack.c.h.b16 %v1024
    %v1350 = vunpack.c.l.b16 %v1025
    %v1351 = vunpack.c.h.b16 %v1025
    %v1352 = vunpack.c.l.b16 %v1026
    %v1353 = vunpack.c.h.b16 %v1026
    %v1354 = vunpack.c.l.b16 %v1027
    %v1355 = vunpack.c.h.b16 %v1027
    %v1356 = vunpack.c.l.b16 %v1028
    %v1357 = vunpack.c.h.b16 %v1028
    %v1358 = vunpack.c.l.b16 %v1029
    %v1359 = vunpack.c.h.b16 %v1029
    %v1360 = vunpack.c.l.b16 %v1030
    %v1361 = vunpack.c.h.b16 %v1030
    %v1362 = vunpack.c.l.b16 %v1031
    %v1363 = vunpack.c.h.b16 %v1031
    %v1364 = vunpack.c.l.b16 %v1032
    %v1365 = vunpack.c.h.b16 %v1032
    %v1366 = vunpack.c.l.b16 %v1033
    %v1367 = vunpack.c.h.b16 %v1033
    %v1368 = vunpack.c.l.b16 %v1034
    %v1369 = vunpack.c.h.b16 %v1034
    %v1370 = vunpack.c.l.b16 %v1035
    %v1371 = vunpack.c.h.b16 %v1035
    %v1372 = vpack.c.b16 %v1310, %v1308
    %v1373 = vpack.c.b16 %v1311, %v1309
    %v1374 = vpack.c.b16 %v1314, %v1312
    %v1375 = vpack.c.b16 %v1315, %v1313
    %v1376 = vpack.c.b16 %v1318, %v1316
    %v1377 = vpack.c.b16 %v1319, %v1317
    %v1378 = vpack.c.b16 %v1322, %v1320
    %v1379 = vpack.c.b16 %v1323, %v1321
    %v1380 = vpack.c.b16 %v1326, %v1324
    %v1381 = vpack.c.b16 %v1327, %v1325
    %v1382 = vpack.c.b16 %v1330, %v1328
    %v1383 = vpack.c.b16 %v1331, %v1329
    %v1384 = vpack.c.b16 %v1334, %v1332
    %v1385 = vpack.c.b16 %v1335, %v1333
    %v1386 = vpack.c.b16 %v1338, %v1336
    %v1387 = vpack.c.b16 %v1339, %v1337
    %v1388 = vpack.c.b16 %v1342, %v1340
    %v1389 = vpack.c.b16 %v1343, %v1341
    %v1390 = vpack.c.b16 %v1346, %v1344
    %v1391 = vpack.c.b16 %v1347, %v1345
    %v1392 = vpack.c.b16 %v1350, %v1348
    %v1393 = vpack.c.b16 %v1351, %v1349
    %v1394 = vpack.c.b16 %v1354, %v1352
    %v1395 = vpack.c.b16 %v1355, %v1353
    %v1396 = vpack.c.b16 %v1358, %v1356
    %v1397 = vpack.c.b16 %v1359, %v1357
    %v1398 = vpack.c.b16 %v1362, %v1360
    %v1399 = vpack.c.b16 %v1363, %v1361
    %v1400 = vpack.c.b16 %v1366, %v1364
    %v1401 = vpack.c.b16 %v1367, %v1365
    %v1402 = vpack.c.b16 %v1370, %v1368
    %v1403 = vpack.c.b16 %v1371, %v1369
    %1436 = vmatprep.subr.bf16.mxu0 %v1373
    %1437 = vmatpush1.bf16.msra.mxu0 %v1372
    %1438 = vmatprep.subr.bf16.mxu0 %v1375
    %1439 = vmatpush1.bf16.msra.mxu0 %v1374
    %1440 = vmatprep.subr.bf16.mxu0 %v1377
    %1441 = vmatpush1.bf16.msra.mxu0 %v1376
    %1442 = vmatprep.subr.bf16.mxu0 %v1379
    %1443 = vmatpush1.bf16.msra.mxu0 %v1378
    %1444 = vmatprep.subr.bf16.mxu0 %v1381
    %1445 = vmatpush1.bf16.msra.mxu0 %v1380
    %1446 = vmatprep.subr.bf16.mxu0 %v1383
    %1447 = vmatpush1.bf16.msra.mxu0 %v1382
    %1448 = vmatprep.subr.bf16.mxu0 %v1385
    %1449 = vmatpush1.bf16.msra.mxu0 %v1384
    %1450 = vmatprep.subr.bf16.mxu0 %v1387
    %1451 = vmatpush1.bf16.msra.mxu0 %v1386
    %1452 = vmatprep.subr.bf16.mxu0 %v1389
    %1453 = vmatpush1.bf16.msra.mxu0 %v1388
    %1454 = vmatprep.subr.bf16.mxu0 %v1391
    %1455 = vmatpush1.bf16.msra.mxu0 %v1390
    %1456 = vmatprep.subr.bf16.mxu0 %v1393
    %1457 = vmatpush1.bf16.msra.mxu0 %v1392
    %1458 = vmatprep.subr.bf16.mxu0 %v1395
    %1459 = vmatpush1.bf16.msra.mxu0 %v1394
    %1460 = vmatprep.subr.bf16.mxu0 %v1397
    %1461 = vmatpush1.bf16.msra.mxu0 %v1396
    %1462 = vmatprep.subr.bf16.mxu0 %v1399
    %1463 = vmatpush1.bf16.msra.mxu0 %v1398
    %1464 = vmatprep.subr.bf16.mxu0 %v1401
    %1465 = vmatpush1.bf16.msra.mxu0 %v1400
    %1466 = vmatprep.subr.bf16.mxu0 %v1403
    %1467 = vmatpush1.bf16.msra.mxu0 %v1402
    %1468 = vmatprep.mubr.bf16.mxu0 %v1003
    %1469 = vmatmul.mubr.bf16.gmra.mrb[0].mxu0 %v1002
    %v1470 = vpop.f32.mrb[0].mxu0
    %v1471 = vadd.f32 %v1270, %v1470
    %v1472 = vpop.f32.mrb[0].mxu0
    %v1473 = vadd.f32 %v1272, %v1472
    %v1474 = vpop.f32.mrb[0].mxu0
    %v1475 = vpop.f32.mrb[0].mxu0
    %1476 = vdwg.mxu0
    %s1477 = scalar_lea.vmem [#allocation8], 512
    %v1478 = vld [vmem:[%s1477] sm:$0xff]
    %v1479 = vld [vmem:[%s1477 + $0x8] sm:$0xff]
    %v1480 = vld [vmem:[%s1477 + $0x10] sm:$0xff]
    %v1481 = vld [vmem:[%s1477 + $0x18] sm:$0xff]
    %v1482 = vld [vmem:[%s1477 + $0x20] sm:$0xff]
    %v1483 = vld [vmem:[%s1477 + $0x28] sm:$0xff]
    %v1484 = vld [vmem:[%s1477 + $0x30] sm:$0xff]
    %v1485 = vld [vmem:[%s1477 + $0x38] sm:$0xff]
    %v1486 = vld [vmem:[%s1477 + $0x40] sm:$0xff]
    %v1487 = vld [vmem:[%s1477 + $0x48] sm:$0xff]
    %v1488 = vld [vmem:[%s1477 + $0x50] sm:$0xff]
    %v1489 = vld [vmem:[%s1477 + $0x58] sm:$0xff]
    %v1490 = vld [vmem:[%s1477 + $0x60] sm:$0xff]
    %v1491 = vld [vmem:[%s1477 + $0x68] sm:$0xff]
    %v1492 = vld [vmem:[%s1477 + $0x70] sm:$0xff]
    %v1493 = vld [vmem:[%s1477 + $0x78] sm:$0xff]
    %v1494 = vld [vmem:[%s1477 + $0x80] sm:$0xff]
    %v1495 = vld [vmem:[%s1477 + $0x88] sm:$0xff]
    %v1496 = vld [vmem:[%s1477 + $0x90] sm:$0xff]
    %v1497 = vld [vmem:[%s1477 + $0x98] sm:$0xff]
    %v1498 = vld [vmem:[%s1477 + $0xa0] sm:$0xff]
    %v1499 = vld [vmem:[%s1477 + $0xa8] sm:$0xff]
    %v1500 = vld [vmem:[%s1477 + $0xb0] sm:$0xff]
    %v1501 = vld [vmem:[%s1477 + $0xb8] sm:$0xff]
    %v1502 = vld [vmem:[%s1477 + $0xc0] sm:$0xff]
    %v1503 = vld [vmem:[%s1477 + $0xc8] sm:$0xff]
    %v1504 = vld [vmem:[%s1477 + $0xd0] sm:$0xff]
    %v1505 = vld [vmem:[%s1477 + $0xd8] sm:$0xff]
    %v1506 = vld [vmem:[%s1477 + $0xe0] sm:$0xff]
    %v1507 = vld [vmem:[%s1477 + $0xe8] sm:$0xff]
    %v1508 = vld [vmem:[%s1477 + $0xf0] sm:$0xff]
    %v1509 = vld [vmem:[%s1477 + $0xf8] sm:$0xff]
    %v1510 = vrot.slane %v1002, 2
    %v1511 = vrot.slane %v1003, 2
    %v1546 = vunpack.c.l.b16 %v1478
    %v1547 = vunpack.c.h.b16 %v1478
    %v1548 = vunpack.c.l.b16 %v1479
    %v1549 = vunpack.c.h.b16 %v1479
    %v1550 = vunpack.c.l.b16 %v1480
    %v1551 = vunpack.c.h.b16 %v1480
    %v1552 = vunpack.c.l.b16 %v1481
    %v1553 = vunpack.c.h.b16 %v1481
    %v1554 = vunpack.c.l.b16 %v1482
    %v1555 = vunpack.c.h.b16 %v1482
    %v1556 = vunpack.c.l.b16 %v1483
    %v1557 = vunpack.c.h.b16 %v1483
    %v1558 = vunpack.c.l.b16 %v1484
    %v1559 = vunpack.c.h.b16 %v1484
    %v1560 = vunpack.c.l.b16 %v1485
    %v1561 = vunpack.c.h.b16 %v1485
    %v1562 = vunpack.c.l.b16 %v1486
    %v1563 = vunpack.c.h.b16 %v1486
    %v1564 = vunpack.c.l.b16 %v1487
    %v1565 = vunpack.c.h.b16 %v1487
    %v1566 = vunpack.c.l.b16 %v1488
    %v1567 = vunpack.c.h.b16 %v1488
    %v1568 = vunpack.c.l.b16 %v1489
    %v1569 = vunpack.c.h.b16 %v1489
    %v1570 = vunpack.c.l.b16 %v1490
    %v1571 = vunpack.c.h.b16 %v1490
    %v1572 = vunpack.c.l.b16 %v1491
    %v1573 = vunpack.c.h.b16 %v1491
    %v1574 = vunpack.c.l.b16 %v1492
    %v1575 = vunpack.c.h.b16 %v1492
    %v1576 = vunpack.c.l.b16 %v1493
    %v1577 = vunpack.c.h.b16 %v1493
    %v1578 = vunpack.c.l.b16 %v1494
    %v1579 = vunpack.c.h.b16 %v1494
    %v1580 = vunpack.c.l.b16 %v1495
    %v1581 = vunpack.c.h.b16 %v1495
    %v1582 = vunpack.c.l.b16 %v1496
    %v1583 = vunpack.c.h.b16 %v1496
    %v1584 = vunpack.c.l.b16 %v1497
    %v1585 = vunpack.c.h.b16 %v1497
    %v1586 = vunpack.c.l.b16 %v1498
    %v1587 = vunpack.c.h.b16 %v1498
    %v1588 = vunpack.c.l.b16 %v1499
    %v1589 = vunpack.c.h.b16 %v1499
    %v1590 = vunpack.c.l.b16 %v1500
    %v1591 = vunpack.c.h.b16 %v1500
    %v1592 = vunpack.c.l.b16 %v1501
    %v1593 = vunpack.c.h.b16 %v1501
    %v1594 = vunpack.c.l.b16 %v1502
    %v1595 = vunpack.c.h.b16 %v1502
    %v1596 = vunpack.c.l.b16 %v1503
    %v1597 = vunpack.c.h.b16 %v1503
    %v1598 = vunpack.c.l.b16 %v1504
    %v1599 = vunpack.c.h.b16 %v1504
    %v1600 = vunpack.c.l.b16 %v1505
    %v1601 = vunpack.c.h.b16 %v1505
    %v1602 = vunpack.c.l.b16 %v1506
    %v1603 = vunpack.c.h.b16 %v1506
    %v1604 = vunpack.c.l.b16 %v1507
    %v1605 = vunpack.c.h.b16 %v1507
    %v1606 = vunpack.c.l.b16 %v1508
    %v1607 = vunpack.c.h.b16 %v1508
    %v1608 = vunpack.c.l.b16 %v1509
    %v1609 = vunpack.c.h.b16 %v1509
    %v1610 = vpack.c.b16 %v1548, %v1546
    %v1611 = vpack.c.b16 %v1549, %v1547
    %v1612 = vpack.c.b16 %v1552, %v1550
    %v1613 = vpack.c.b16 %v1553, %v1551
    %v1614 = vpack.c.b16 %v1556, %v1554
    %v1615 = vpack.c.b16 %v1557, %v1555
    %v1616 = vpack.c.b16 %v1560, %v1558
    %v1617 = vpack.c.b16 %v1561, %v1559
    %v1618 = vpack.c.b16 %v1564, %v1562
    %v1619 = vpack.c.b16 %v1565, %v1563
    %v1620 = vpack.c.b16 %v1568, %v1566
    %v1621 = vpack.c.b16 %v1569, %v1567
    %v1622 = vpack.c.b16 %v1572, %v1570
    %v1623 = vpack.c.b16 %v1573, %v1571
    %v1624 = vpack.c.b16 %v1576, %v1574
    %v1625 = vpack.c.b16 %v1577, %v1575
    %v1626 = vpack.c.b16 %v1580, %v1578
    %v1627 = vpack.c.b16 %v1581, %v1579
    %v1628 = vpack.c.b16 %v1584, %v1582
    %v1629 = vpack.c.b16 %v1585, %v1583
    %v1630 = vpack.c.b16 %v1588, %v1586
    %v1631 = vpack.c.b16 %v1589, %v1587
    %v1632 = vpack.c.b16 %v1592, %v1590
    %v1633 = vpack.c.b16 %v1593, %v1591
    %v1634 = vpack.c.b16 %v1596, %v1594
    %v1635 = vpack.c.b16 %v1597, %v1595
    %v1636 = vpack.c.b16 %v1600, %v1598
    %v1637 = vpack.c.b16 %v1601, %v1599
    %v1638 = vpack.c.b16 %v1604, %v1602
    %v1639 = vpack.c.b16 %v1605, %v1603
    %v1640 = vpack.c.b16 %v1608, %v1606
    %v1641 = vpack.c.b16 %v1609, %v1607
    %1674 = vmatprep.subr.bf16.mxu0 %v1611
    %1675 = vmatpush1.bf16.msra.mxu0 %v1610
    %1676 = vmatprep.subr.bf16.mxu0 %v1613
    %1677 = vmatpush1.bf16.msra.mxu0 %v1612
    %1678 = vmatprep.subr.bf16.mxu0 %v1615
    %1679 = vmatpush1.bf16.msra.mxu0 %v1614
    %1680 = vmatprep.subr.bf16.mxu0 %v1617
    %1681 = vmatpush1.bf16.msra.mxu0 %v1616
    %1682 = vmatprep.subr.bf16.mxu0 %v1619
    %1683 = vmatpush1.bf16.msra.mxu0 %v1618
    %1684 = vmatprep.subr.bf16.mxu0 %v1621
    %1685 = vmatpush1.bf16.msra.mxu0 %v1620
    %1686 = vmatprep.subr.bf16.mxu0 %v1623
    %1687 = vmatpush1.bf16.msra.mxu0 %v1622
    %1688 = vmatprep.subr.bf16.mxu0 %v1625
    %1689 = vmatpush1.bf16.msra.mxu0 %v1624
    %1690 = vmatprep.subr.bf16.mxu0 %v1627
    %1691 = vmatpush1.bf16.msra.mxu0 %v1626
    %1692 = vmatprep.subr.bf16.mxu0 %v1629
    %1693 = vmatpush1.bf16.msra.mxu0 %v1628
    %1694 = vmatprep.subr.bf16.mxu0 %v1631
    %1695 = vmatpush1.bf16.msra.mxu0 %v1630
    %1696 = vmatprep.subr.bf16.mxu0 %v1633
    %1697 = vmatpush1.bf16.msra.mxu0 %v1632
    %1698 = vmatprep.subr.bf16.mxu0 %v1635
    %1699 = vmatpush1.bf16.msra.mxu0 %v1634
    %1700 = vmatprep.subr.bf16.mxu0 %v1637
    %1701 = vmatpush1.bf16.msra.mxu0 %v1636
    %1702 = vmatprep.subr.bf16.mxu0 %v1639
    %1703 = vmatpush1.bf16.msra.mxu0 %v1638
    %1704 = vmatprep.subr.bf16.mxu0 %v1641
    %1705 = vmatpush1.bf16.msra.mxu0 %v1640
    %1706 = vmatprep.mubr.bf16.mxu0 %v1511
    %1707 = vmatmul.mubr.bf16.gmra.mrb[0].mxu0 %v1510
    %v1708 = vpop.f32.mrb[0].mxu0
    %v1709 = vadd.f32 0.0, %v1708
    %v1710 = vpop.f32.mrb[0].mxu0
    %v1711 = vadd.f32 0.0, %v1710
    %v1712 = vpop.f32.mrb[0].mxu0
    %v1713 = vpop.f32.mrb[0].mxu0
    %1714 = vdwg.mxu0
    %v1715 = vadd.f32 %v1471, %v1709
    %v1716 = vadd.f32 %v1473, %v1711
    %s1717 = scalar_lea.vmem [#allocation8], 768
    %v1718 = vld [vmem:[%s1717] sm:$0xff]
    %v1719 = vld [vmem:[%s1717 + $0x8] sm:$0xff]
    %v1720 = vld [vmem:[%s1717 + $0x10] sm:$0xff]
    %v1721 = vld [vmem:[%s1717 + $0x18] sm:$0xff]
    %v1722 = vld [vmem:[%s1717 + $0x20] sm:$0xff]
    %v1723 = vld [vmem:[%s1717 + $0x28] sm:$0xff]
    %v1724 = vld [vmem:[%s1717 + $0x30] sm:$0xff]
    %v1725 = vld [vmem:[%s1717 + $0x38] sm:$0xff]
    %v1726 = vld [vmem:[%s1717 + $0x40] sm:$0xff]
    %v1727 = vld [vmem:[%s1717 + $0x48] sm:$0xff]
    %v1728 = vld [vmem:[%s1717 + $0x50] sm:$0xff]
    %v1729 = vld [vmem:[%s1717 + $0x58] sm:$0xff]
    %v1730 = vld [vmem:[%s1717 + $0x60] sm:$0xff]
    %v1731 = vld [vmem:[%s1717 + $0x68] sm:$0xff]
    %v1732 = vld [vmem:[%s1717 + $0x70] sm:$0xff]
    %v1733 = vld [vmem:[%s1717 + $0x78] sm:$0xff]
    %v1734 = vld [vmem:[%s1717 + $0x80] sm:$0xff]
    %v1735 = vld [vmem:[%s1717 + $0x88] sm:$0xff]
    %v1736 = vld [vmem:[%s1717 + $0x90] sm:$0xff]
    %v1737 = vld [vmem:[%s1717 + $0x98] sm:$0xff]
    %v1738 = vld [vmem:[%s1717 + $0xa0] sm:$0xff]
    %v1739 = vld [vmem:[%s1717 + $0xa8] sm:$0xff]
    %v1740 = vld [vmem:[%s1717 + $0xb0] sm:$0xff]
    %v1741 = vld [vmem:[%s1717 + $0xb8] sm:$0xff]
    %v1742 = vld [vmem:[%s1717 + $0xc0] sm:$0xff]
    %v1743 = vld [vmem:[%s1717 + $0xc8] sm:$0xff]
    %v1744 = vld [vmem:[%s1717 + $0xd0] sm:$0xff]
    %v1745 = vld [vmem:[%s1717 + $0xd8] sm:$0xff]
    %v1746 = vld [vmem:[%s1717 + $0xe0] sm:$0xff]
    %v1747 = vld [vmem:[%s1717 + $0xe8] sm:$0xff]
    %v1748 = vld [vmem:[%s1717 + $0xf0] sm:$0xff]
    %v1749 = vld [vmem:[%s1717 + $0xf8] sm:$0xff]
    %v1750 = vrot.slane %v1002, 3
    %v1751 = vrot.slane %v1003, 3
    %v1786 = vunpack.c.l.b16 %v1718
    %v1787 = vunpack.c.h.b16 %v1718
    %v1788 = vunpack.c.l.b16 %v1719
    %v1789 = vunpack.c.h.b16 %v1719
    %v1790 = vunpack.c.l.b16 %v1720
    %v1791 = vunpack.c.h.b16 %v1720
    %v1792 = vunpack.c.l.b16 %v1721
    %v1793 = vunpack.c.h.b16 %v1721
    %v1794 = vunpack.c.l.b16 %v1722
    %v1795 = vunpack.c.h.b16 %v1722
    %v1796 = vunpack.c.l.b16 %v1723
    %v1797 = vunpack.c.h.b16 %v1723
    %v1798 = vunpack.c.l.b16 %v1724
    %v1799 = vunpack.c.h.b16 %v1724
    %v1800 = vunpack.c.l.b16 %v1725
    %v1801 = vunpack.c.h.b16 %v1725
    %v1802 = vunpack.c.l.b16 %v1726
    %v1803 = vunpack.c.h.b16 %v1726
    %v1804 = vunpack.c.l.b16 %v1727
    %v1805 = vunpack.c.h.b16 %v1727
    %v1806 = vunpack.c.l.b16 %v1728
    %v1807 = vunpack.c.h.b16 %v1728
    %v1808 = vunpack.c.l.b16 %v1729
    %v1809 = vunpack.c.h.b16 %v1729
    %v1810 = vunpack.c.l.b16 %v1730
    %v1811 = vunpack.c.h.b16 %v1730
    %v1812 = vunpack.c.l.b16 %v1731
    %v1813 = vunpack.c.h.b16 %v1731
    %v1814 = vunpack.c.l.b16 %v1732
    %v1815 = vunpack.c.h.b16 %v1732
    %v1816 = vunpack.c.l.b16 %v1733
    %v1817 = vunpack.c.h.b16 %v1733
    %v1818 = vunpack.c.l.b16 %v1734
    %v1819 = vunpack.c.h.b16 %v1734
    %v1820 = vunpack.c.l.b16 %v1735
    %v1821 = vunpack.c.h.b16 %v1735
    %v1822 = vunpack.c.l.b16 %v1736
    %v1823 = vunpack.c.h.b16 %v1736
    %v1824 = vunpack.c.l.b16 %v1737
    %v1825 = vunpack.c.h.b16 %v1737
    %v1826 = vunpack.c.l.b16 %v1738
    %v1827 = vunpack.c.h.b16 %v1738
    %v1828 = vunpack.c.l.b16 %v1739
    %v1829 = vunpack.c.h.b16 %v1739
    %v1830 = vunpack.c.l.b16 %v1740
    %v1831 = vunpack.c.h.b16 %v1740
    %v1832 = vunpack.c.l.b16 %v1741
    %v1833 = vunpack.c.h.b16 %v1741
    %v1834 = vunpack.c.l.b16 %v1742
    %v1835 = vunpack.c.h.b16 %v1742
    %v1836 = vunpack.c.l.b16 %v1743
    %v1837 = vunpack.c.h.b16 %v1743
    %v1838 = vunpack.c.l.b16 %v1744
    %v1839 = vunpack.c.h.b16 %v1744
    %v1840 = vunpack.c.l.b16 %v1745
    %v1841 = vunpack.c.h.b16 %v1745
    %v1842 = vunpack.c.l.b16 %v1746
    %v1843 = vunpack.c.h.b16 %v1746
    %v1844 = vunpack.c.l.b16 %v1747
    %v1845 = vunpack.c.h.b16 %v1747
    %v1846 = vunpack.c.l.b16 %v1748
    %v1847 = vunpack.c.h.b16 %v1748
    %v1848 = vunpack.c.l.b16 %v1749
    %v1849 = vunpack.c.h.b16 %v1749
    %v1850 = vpack.c.b16 %v1788, %v1786
    %v1851 = vpack.c.b16 %v1789, %v1787
    %v1852 = vpack.c.b16 %v1792, %v1790
    %v1853 = vpack.c.b16 %v1793, %v1791
    %v1854 = vpack.c.b16 %v1796, %v1794
    %v1855 = vpack.c.b16 %v1797, %v1795
    %v1856 = vpack.c.b16 %v1800, %v1798
    %v1857 = vpack.c.b16 %v1801, %v1799
    %v1858 = vpack.c.b16 %v1804, %v1802
    %v1859 = vpack.c.b16 %v1805, %v1803
    %v1860 = vpack.c.b16 %v1808, %v1806
    %v1861 = vpack.c.b16 %v1809, %v1807
    %v1862 = vpack.c.b16 %v1812, %v1810
    %v1863 = vpack.c.b16 %v1813, %v1811
    %v1864 = vpack.c.b16 %v1816, %v1814
    %v1865 = vpack.c.b16 %v1817, %v1815
    %v1866 = vpack.c.b16 %v1820, %v1818
    %v1867 = vpack.c.b16 %v1821, %v1819
    %v1868 = vpack.c.b16 %v1824, %v1822
    %v1869 = vpack.c.b16 %v1825, %v1823
    %v1870 = vpack.c.b16 %v1828, %v1826
    %v1871 = vpack.c.b16 %v1829, %v1827
    %v1872 = vpack.c.b16 %v1832, %v1830
    %v1873 = vpack.c.b16 %v1833, %v1831
    %v1874 = vpack.c.b16 %v1836, %v1834
    %v1875 = vpack.c.b16 %v1837, %v1835
    %v1876 = vpack.c.b16 %v1840, %v1838
    %v1877 = vpack.c.b16 %v1841, %v1839
    %v1878 = vpack.c.b16 %v1844, %v1842
    %v1879 = vpack.c.b16 %v1845, %v1843
    %v1880 = vpack.c.b16 %v1848, %v1846
    %v1881 = vpack.c.b16 %v1849, %v1847
    %1914 = vmatprep.subr.bf16.mxu0 %v1851
    %1915 = vmatpush1.bf16.msra.mxu0 %v1850
    %1916 = vmatprep.subr.bf16.mxu0 %v1853
    %1917 = vmatpush1.bf16.msra.mxu0 %v1852
    %1918 = vmatprep.subr.bf16.mxu0 %v1855
    %1919 = vmatpush1.bf16.msra.mxu0 %v1854
    %1920 = vmatprep.subr.bf16.mxu0 %v1857
    %1921 = vmatpush1.bf16.msra.mxu0 %v1856
    %1922 = vmatprep.subr.bf16.mxu0 %v1859
    %1923 = vmatpush1.bf16.msra.mxu0 %v1858
    %1924 = vmatprep.subr.bf16.mxu0 %v1861
    %1925 = vmatpush1.bf16.msra.mxu0 %v1860
    %1926 = vmatprep.subr.bf16.mxu0 %v1863
    %1927 = vmatpush1.bf16.msra.mxu0 %v1862
    %1928 = vmatprep.subr.bf16.mxu0 %v1865
    %1929 = vmatpush1.bf16.msra.mxu0 %v1864
    %1930 = vmatprep.subr.bf16.mxu0 %v1867
    %1931 = vmatpush1.bf16.msra.mxu0 %v1866
    %1932 = vmatprep.subr.bf16.mxu0 %v1869
    %1933 = vmatpush1.bf16.msra.mxu0 %v1868
    %1934 = vmatprep.subr.bf16.mxu0 %v1871
    %1935 = vmatpush1.bf16.msra.mxu0 %v1870
    %1936 = vmatprep.subr.bf16.mxu0 %v1873
    %1937 = vmatpush1.bf16.msra.mxu0 %v1872
    %1938 = vmatprep.subr.bf16.mxu0 %v1875
    %1939 = vmatpush1.bf16.msra.mxu0 %v1874
    %1940 = vmatprep.subr.bf16.mxu0 %v1877
    %1941 = vmatpush1.bf16.msra.mxu0 %v1876
    %1942 = vmatprep.subr.bf16.mxu0 %v1879
    %1943 = vmatpush1.bf16.msra.mxu0 %v1878
    %1944 = vmatprep.subr.bf16.mxu0 %v1881
    %1945 = vmatpush1.bf16.msra.mxu0 %v1880
    %1946 = vmatprep.mubr.bf16.mxu0 %v1751
    %1947 = vmatmul.mubr.bf16.gmra.mrb[0].mxu0 %v1750
    %v1948 = vpop.f32.mrb[0].mxu0
    %v1949 = vadd.f32 0.0, %v1948
    %v1950 = vpop.f32.mrb[0].mxu0
    %v1951 = vadd.f32 0.0, %v1950
    %v1952 = vpop.f32.mrb[0].mxu0
    %v1953 = vpop.f32.mrb[0].mxu0
    %1954 = vdwg.mxu0
    %v1955 = vadd.f32 %v1715, %v1949
    %v1956 = vadd.f32 %v1716, %v1951
    %v1957 = vld [vmem:[%s7] sm:$0x3]
    %v1959 = vlaneseq
    %v1960 = vshrl.u32 %v1959, 7
    %v1961 = vsub.s32 0, %v1960
    %v1962 = vrot.slane %v1957, %v1961
    %v1963 = vlaneseq
    %v1964 = vshrl.u32 %v1963, 7
    %v1965 = vsub.s32 1, %v1964
    %v1966 = vrot.slane %v1957, %v1965
    %v1969 = vadd.f32 %v1955, %v1962
    %v1970 = vadd.f32 %v1956, %v1966
    %v1971 = vmax.f32 %v1969, 0.0
    %v1972 = vmax.f32 %v1970, 0.0
    %v1975 = vcombine.low %v1971, %v1972
    %v1977 = vunpack.c.l.s4 1983009808
    %v1978 = vunpack.c.0.s8 %v1977
    %v1979 = vlaneseq
    %v1980 = vshrl.u32 %v1979, 7
    %v1981 = vsub.s32 %v1978, %v1980
    %v1982 = vrot.slane %v1975, %v1981
    %1984 = vst [vmem:[#allocation9] sm:$0xf] %v1982
    // Predicated region
    $region46: #{tpu_custom_call.1} parent=1 // pred_check
      _
    $region47: #{tpu_custom_call.1} parent=1 // pred_check_branch
      %1986 = sbr.rel (0) target = $region49
    $region48: #{tpu_custom_call.1} parent=1 // pred_region
      %s1988 = ssub.s32 64, 64
      %1989 = vsyncadd [#allocation5], %s1988
      %s1991 = sshll.u32 [#allocation9], 4
      %s1992 = int_to_ptr.vmem [resolvable:$true] %s1991
      %1994 = dma.vmem_to_hbm [thread:$0]  %s1992, 64, %s8, [#allocation5]
    $region49: #{tpu_custom_call.1} parent=1 // pred_fallthru
      _
    // Predicated region
    $region50: #{tpu_custom_call.1} parent=1 // pred_check
      _
    $region51: #{tpu_custom_call.1} parent=1 // pred_check_branch
      %1996 = sbr.rel (0) target = $region53
    $region52: #{tpu_custom_call.1} parent=1 // pred_region
      %1997 = dma.done [#allocation5], 64
    $region53: #{tpu_custom_call.1} parent=1 // pred_fallthru
      _
    %1998 = vsyncpa [#allocation4], 1
    %1999 = vsyncpa [#allocation7], 1
    %2000 = vsyncpa [#allocation5], 1

</llo_original>
